<compile_context>
chip_gen: v7x
topology: tpu7x:2x2x1
jax: 0.10.0
libtpu: 0.0.40
codegen_flags: <defaults>
</compile_context>

<pallas_src>
import functools
import math

import jax
import jax.numpy as jnp
import numpy as np
from jax.experimental import pallas as pl
from jax.experimental.pallas import tpu as pltpu

# Small synthetic config (BERT-like)
B, S, H, NH, HD, F, V, NLAYERS = 2, 8, 32, 2, 16, 64, 50, 2
BS = B * S
LN_EPS = 1e-12
SCALE = 1.0 / math.sqrt(HD)
NEG_INF = -1e9

# TODO(synk): HuggingFace AutoTokenizer (string -> ids) has no Pallas equivalent; inputs
# are pre-tokenized ids + attention mask. Pretrained checkpoint loading is replaced by
# deterministic synthetic weights.


def _layernorm(x, g, b):
    mu = jnp.mean(x, axis=-1, keepdims=True)
    var = jnp.mean((x - mu) ** 2, axis=-1, keepdims=True)
    return (x - mu) * jax.lax.rsqrt(var + LN_EPS) * g + b


# ---------------------------------------------------------------------------
# Fused Pallas kernel: one grid step per encoder layer; pooling on the last step.
# ---------------------------------------------------------------------------
def fused_sbert_kernel(x_ref, bias_ref, mask_ref,
                       wqkv_ref, bqkv_ref, wo_ref, bo_ref, ln1g_ref, ln1b_ref,
                       w1_ref, b1_ref, w2_ref, b2_ref, ln2g_ref, ln2b_ref,
                       out_ref, x_sc, *, pooling):
    l = pl.program_id(0)

    @pl.when(l == 0)
    def _():
        x_sc[...] = x_ref[...]                       # load resident activations once

    x = x_sc[...]                                    # (BS, H) fp32
    x_bf = x.astype(jnp.bfloat16)
    attn_bias = bias_ref[...]                        # (BS, BS) fp32 block-diag mask bias

    # --- fused QKV projection: single (BS,H)@(H,3H) bf16 matmul, fp32 accumulate ---
    qkv = jnp.dot(x_bf, wqkv_ref[0],
                  preferred_element_type=jnp.float32) + bqkv_ref[0]   # (BS, 3H) fp32

    # --- per-head attention; contexts lane-concatenated for one Wo matmul ---
    # TODO(synk): at real NH use lax.fori_loop(..., unroll=True) to bound live ranges.
    ctx_heads = []
    for h in range(NH):
        q = qkv[:, h * HD:(h + 1) * HD].astype(jnp.bfloat16)
        k = qkv[:, H + h * HD:H + (h + 1) * HD].astype(jnp.bfloat16)
        v = qkv[:, 2 * H + h * HD:2 * H + (h + 1) * HD].astype(jnp.bfloat16)
        s = jax.lax.dot_general(q, k, (((1,), (1,)), ((), ())),
                                preferred_element_type=jnp.float32) * SCALE + attn_bias
        s_max = jnp.max(s, axis=-1, keepdims=True)
        e = jnp.exp(s - s_max)
        denom = jnp.sum(e, axis=-1, keepdims=True)
        p = e * pl.reciprocal(denom, approx=True)           # EUP reciprocal
        ctx_heads.append(jnp.dot(p.astype(jnp.bfloat16), v,
                                 preferred_element_type=jnp.float32))   # (BS, HD)
    ctx = jnp.concatenate(ctx_heads, axis=-1)                # (BS, H)
    attn = jnp.dot(ctx.astype(jnp.bfloat16), wo_ref[0],
                   preferred_element_type=jnp.float32) + bo_ref[0]
    h1 = _layernorm(x + attn, ln1g_ref[0], ln1b_ref[0])      # fp32

    # --- feed-forward (bf16 operands, fp32 accumulate / elementwise) ---
    ff = jax.nn.gelu(jnp.dot(h1.astype(jnp.bfloat16), w1_ref[0],
                             preferred_element_type=jnp.float32) + b1_ref[0])
    ff2 = jnp.dot(ff.astype(jnp.bfloat16), w2_ref[0],
                  preferred_element_type=jnp.float32) + b2_ref[0]
    x_new = _layernorm(h1 + ff2, ln2g_ref[0], ln2b_ref[0])
    x_sc[...] = x_new                                        # carry to next layer step

    # --- masked pooling on the last layer step; single axis-1 reduce, [B, H] out ---
    @pl.when(l == pl.num_programs(0) - 1)
    def _():
        x3 = x_new.reshape(B, S, H)
        m3 = mask_ref[...].reshape(B, S, 1)                  # float {0,1}
        if pooling == 'max':
            out_ref[...] = jnp.max(
                jnp.where(m3 == 0.0, jnp.float32(NEG_INF), x3), axis=1)
        else:
            num = jnp.sum(x3 * m3, axis=1)
            den = jnp.maximum(jnp.sum(m3, axis=1), 1e-9)
            out_ref[...] = num * pl.reciprocal(den, approx=True)


# ---------------------------------------------------------------------------
# Parameter stacking (host-side layout plumbing, not compute)
# ---------------------------------------------------------------------------
def _stack_layer_params(layers):
    # Fused QKV weight (H, 3H) per layer: columns [0:H)=Q, [H:2H)=K, [2H:3H)=V; heads
    # remain contiguous HD-wide column blocks inside each section.  Matmul operands
    # are stored in bf16; biases / LN params stay fp32.
    wqkv = jnp.stack([jnp.concatenate([l[0], l[2], l[4]], axis=1)
                      for l in layers]).astype(jnp.bfloat16)            # (L, H, 3H)
    bqkv = jnp.stack([jnp.concatenate([l[1], l[3], l[5]], axis=1)
                      for l in layers])                                 # (L, 1, 3H)
    wo = jnp.stack([l[6] for l in layers]).astype(jnp.bfloat16)         # (L, H, H)
    bo = jnp.stack([l[7] for l in layers])                              # (L, 1, H)
    ln1g = jnp.stack([l[8] for l in layers])
    ln1b = jnp.stack([l[9] for l in layers])
    w1 = jnp.stack([l[10] for l in layers]).astype(jnp.bfloat16)        # (L, H, F)
    b1 = jnp.stack([l[11] for l in layers])                             # (L, 1, F)
    w2 = jnp.stack([l[12] for l in layers]).astype(jnp.bfloat16)        # (L, F, H)
    b2 = jnp.stack([l[13] for l in layers])                             # (L, 1, H)
    ln2g = jnp.stack([l[14] for l in layers])
    ln2b = jnp.stack([l[15] for l in layers])
    return (wqkv, bqkv, wo, bo, ln1g, ln1b, w1, b1, w2, b2, ln2g, ln2b)


# ---------------------------------------------------------------------------
# Parameters & forward pass
# ---------------------------------------------------------------------------
def init_params(key):
    keys = list(jax.random.split(key, 64))
    it = iter(keys)

    def nrm(shape, scale=0.02):
        return (scale * jax.random.normal(next(it), shape)).astype(jnp.float32)

    word_emb = nrm((V, H))
    pos_emb = nrm((S, H))
    emb_ln_g = jnp.ones((1, H), jnp.float32)
    emb_ln_b = jnp.zeros((1, H), jnp.float32)

    layers = []
    for _ in range(NLAYERS):
        layers.append([
            nrm((H, H)), jnp.zeros((1, H), jnp.float32),   # Wq, bq
            nrm((H, H)), jnp.zeros((1, H), jnp.float32),   # Wk, bk
            nrm((H, H)), jnp.zeros((1, H), jnp.float32),   # Wv, bv
            nrm((H, H)), jnp.zeros((1, H), jnp.float32),   # Wo, bo
            jnp.ones((1, H), jnp.float32), jnp.zeros((1, H), jnp.float32),   # LN1
            nrm((H, F)), jnp.zeros((1, F), jnp.float32),   # W1, b1
            nrm((F, H)), jnp.zeros((1, H), jnp.float32),   # W2, b2
            jnp.ones((1, H), jnp.float32), jnp.zeros((1, H), jnp.float32),   # LN2
        ])
    return word_emb, pos_emb, emb_ln_g, emb_ln_b, layers


def embed(token_ids, params):
    # TODO(synk): embedding gather stays as JAX glue (tiny table lookup).
    word_emb, pos_emb, eg, eb, _ = params
    x = word_emb[token_ids] + pos_emb[None, :, :]
    return _layernorm(x, eg, eb)


def sbert_forward(token_ids, attention_mask, params, pooling='max'):
    x = embed(token_ids, params)                       # (B, S, H) fp32
    mask_f = attention_mask.astype(jnp.float32)
    x_rows = x.reshape(BS, H)                          # sublane/lane-dense slab
    mask_sub = mask_f.reshape(BS, 1)                   # pooling mask (sublane layout)

    # Block-diagonal additive attention bias: 0 for (same sequence, valid key),
    # -1e9 otherwise.  Host-side layout glue; resident across all layer steps.
    # TODO(synk): re-tile attention per sequence / flash-style before scaling up.
    row_b = (jnp.arange(BS) // S)[:, None]
    col_b = (jnp.arange(BS) // S)[None, :]
    valid = (row_b == col_b) & (mask_f.reshape(1, BS) > 0.5)
    attn_bias = jnp.where(valid, 0.0, NEG_INF).astype(jnp.float32)

    stacked = _stack_layer_params(params[4])
    kern = functools.partial(fused_sbert_kernel, pooling=pooling)

    const2 = lambda shape: pl.BlockSpec(shape, lambda l: (0, 0))          # resident
    layer3 = lambda shape: pl.BlockSpec((1,) + shape, lambda l: (l, 0, 0))  # streamed

    grid_spec = pltpu.PrefetchScalarGridSpec(
        num_scalar_prefetch=0,
        grid=(NLAYERS,),
        in_specs=[
            const2((BS, H)),       # x_rows (read at l==0 into scratch)
            const2((BS, BS)),      # attn_bias
            const2((BS, 1)),       # mask_sub (used at last step)
            layer3((H, 3 * H)),    # wqkv (bf16)
            layer3((1, 3 * H)),    # bqkv
            layer3((H, H)),        # wo (bf16)
            layer3((1, H)),        # bo
            layer3((1, H)),        # ln1g
            layer3((1, H)),        # ln1b
            layer3((H, F)),        # w1 (bf16)
            layer3((1, F)),        # b1
            layer3((F, H)),        # w2 (bf16)
            layer3((1, H)),        # b2
            layer3((1, H)),        # ln2g
            layer3((1, H)),        # ln2b
        ],
        out_specs=pl.BlockSpec((B, H), lambda l: (0, 0)),
        scratch_shapes=[pltpu.VMEM((BS, H), jnp.float32)],   # resident activations
    )

    return pl.pallas_call(
        kern,
        out_shape=jax.ShapeDtypeStruct((B, H), jnp.float32),
        grid_spec=grid_spec,
        compiler_params=pltpu.CompilerParams(
            dimension_semantics=("arbitrary",),       # layer axis carries state
            vmem_limit_bytes=48 * 1024 * 1024,        # headroom even on v7x (64 MiB)
        ),
    )(x_rows, attn_bias, mask_sub, *stacked)


# ---------------------------------------------------------------------------
# Pure-JAX fp32 reference (same math) for validation
# ---------------------------------------------------------------------------
def ref_encoder_layer(x, mask_b1s, p):
    (wq, bq, wk, bk, wv, bv, wo, bo, ln1g, ln1b, w1, b1, w2, b2, ln2g, ln2b) = p
    outs = []
    for bi in range(x.shape[0]):
        xb = x[bi]
        bias = (mask_b1s[bi] - 1.0) * 1e9
        q = xb @ wq + bq
        k = xb @ wk + bk
        v = xb @ wv + bv
        ctxs = []
        for h in range(NH):
            sl = slice(h * HD, (h + 1) * HD)
            s = (q[:, sl] @ k[:, sl].T) * SCALE + bias
            ctxs.append(jax.nn.softmax(s, axis=-1) @ v[:, sl])
        ctx = jnp.concatenate(ctxs, axis=-1)
        h1 = _layernorm(xb + ctx @ wo + bo, ln1g, ln1b)
        ff = jax.nn.gelu(h1 @ w1 + b1) @ w2 + b2
        outs.append(_layernorm(h1 + ff, ln2g, ln2b))
    return jnp.stack(outs)


def ref_forward(token_ids, attention_mask, params, pooling='max'):
    x = embed(token_ids, params)
    mask_f = attention_mask.astype(jnp.float32)
    mask_b1s = mask_f[:, None, :]
    for layer in params[4]:
        x = ref_encoder_layer(x, mask_b1s, layer)
    m = mask_f[:, :, None]
    if pooling == 'max':
        return jnp.max(jnp.where(m == 0.0, -1e9, x), axis=1)
    return jnp.sum(x * m, axis=1) / jnp.maximum(jnp.sum(m, axis=1), 1e-9)


if __name__ == "__main__":
    key = jax.random.PRNGKey(0)
    kp, kt = jax.random.split(key)
    params = init_params(kp)

    token_ids = jax.random.randint(kt, (B, S), 0, V, dtype=jnp.int32)
    lengths = jnp.array([S, 5], dtype=jnp.int32)
    attention_mask = (jnp.arange(S)[None, :] < lengths[:, None]).astype(jnp.int32)

    pooled = sbert_forward(token_ids, attention_mask, params, pooling='max')
    pooled = jax.block_until_ready(pooled)
    assert pooled.shape == (B, H)

    # Tolerance accounts for bf16 matmul operands (fp32 accumulation) and the EUP
    # approximate reciprocal in softmax / mean pooling vs. the exact-fp32 reference.
    ref = ref_forward(token_ids, attention_mask, params, pooling='max')
    np.testing.assert_allclose(np.asarray(pooled), np.asarray(ref), atol=2e-2, rtol=2e-2)

    # also exercise the mean-pooling variant once
    pooled_mean = jax.block_until_ready(
        sbert_forward(token_ids, attention_mask, params, pooling='mean'))
    ref_mean = ref_forward(token_ids, attention_mask, params, pooling='mean')
    np.testing.assert_allclose(np.asarray(pooled_mean), np.asarray(ref_mean),
                               atol=2e-2, rtol=2e-2)

    print("KERNEL_OK")
</pallas_src>

<mosaic_0001>
module attributes {stable_mosaic.version = 11 : i64} {
  func.func @fused_sbert_kernel(%arg0: i32, %arg1: memref<16x32xf32, #tpu.memory_space<vmem>>, %arg2: memref<16x16xf32, #tpu.memory_space<vmem>>, %arg3: memref<16x1xf32, #tpu.memory_space<vmem>>, %arg4: memref<1x32x96xbf16, #tpu.memory_space<vmem>>, %arg5: memref<1x1x96xf32, #tpu.memory_space<vmem>>, %arg6: memref<1x32x32xbf16, #tpu.memory_space<vmem>>, %arg7: memref<1x1x32xf32, #tpu.memory_space<vmem>>, %arg8: memref<1x1x32xf32, #tpu.memory_space<vmem>>, %arg9: memref<1x1x32xf32, #tpu.memory_space<vmem>>, %arg10: memref<1x32x64xbf16, #tpu.memory_space<vmem>>, %arg11: memref<1x1x64xf32, #tpu.memory_space<vmem>>, %arg12: memref<1x64x32xbf16, #tpu.memory_space<vmem>>, %arg13: memref<1x1x32xf32, #tpu.memory_space<vmem>>, %arg14: memref<1x1x32xf32, #tpu.memory_space<vmem>>, %arg15: memref<1x1x32xf32, #tpu.memory_space<vmem>>, %arg16: memref<2x32xf32, #tpu.memory_space<vmem>>, %arg17: memref<16x32xf32, #tpu.memory_space<vmem>>) attributes {dimension_semantics = [#tpu.dimension_semantics<arbitrary>], iteration_bounds = array<i64: 2>, scalar_prefetch = 0 : i64, scratch_operands = 1 : i64, tpu.core_type = #tpu.core_type<tc>, window_params = [{pipeline_mode = #tpu.pipeline_mode<synchronous>, transform_indices = @transform_0, window_bounds = array<i64: 16, 32>}, {pipeline_mode = #tpu.pipeline_mode<synchronous>, transform_indices = @transform_1, window_bounds = array<i64: 16, 16>}, {pipeline_mode = #tpu.pipeline_mode<synchronous>, transform_indices = @transform_2, window_bounds = array<i64: 16, 1>}, {transform_indices = @transform_3, window_bounds = array<i64: 1, 32, 96>}, {transform_indices = @transform_4, window_bounds = array<i64: 1, 1, 96>}, {transform_indices = @transform_5, window_bounds = array<i64: 1, 32, 32>}, {transform_indices = @transform_6, window_bounds = array<i64: 1, 1, 32>}, {transform_indices = @transform_7, window_bounds = array<i64: 1, 1, 32>}, {transform_indices = @transform_8, window_bounds = array<i64: 1, 1, 32>}, {transform_indices = @transform_9, window_bounds = array<i64: 1, 32, 64>}, {transform_indices = @transform_10, window_bounds = array<i64: 1, 1, 64>}, {transform_indices = @transform_11, window_bounds = array<i64: 1, 64, 32>}, {transform_indices = @transform_12, window_bounds = array<i64: 1, 1, 32>}, {transform_indices = @transform_13, window_bounds = array<i64: 1, 1, 32>}, {transform_indices = @transform_14, window_bounds = array<i64: 1, 1, 32>}, {pipeline_mode = #tpu.pipeline_mode<synchronous>, transform_indices = @transform_15, window_bounds = array<i64: 2, 32>}]} {
    %c0_i32 = arith.constant 0 : i32
    %0 = arith.cmpi eq, %arg0, %c0_i32 : i32
    %1 = arith.extui %0 : i1 to i32
    %c0_i32_0 = arith.constant 0 : i32
    %2 = arith.cmpi ne, %1, %c0_i32_0 : i32
    scf.if %2 {
      %c0_70 = arith.constant 0 : index
      %c0_71 = arith.constant 0 : index
      %153 = vector.load %arg1[%c0_70, %c0_71] : memref<16x32xf32, #tpu.memory_space<vmem>>, vector<16x32xf32>
      %c0_72 = arith.constant 0 : index
      %c0_73 = arith.constant 0 : index
      %154 = vector.load %arg17[%c0_72, %c0_73] : memref<16x32xf32, #tpu.memory_space<vmem>>, vector<16x32xf32>
      tpu.vector_store %arg17[%c0_72, %c0_73], %153 {strides = array<i32>} : memref<16x32xf32, #tpu.memory_space<vmem>>, vector<16x32xf32>,
    } else {
    }
    %c0 = arith.constant 0 : index
    %c0_1 = arith.constant 0 : index
    %3 = vector.load %arg17[%c0, %c0_1] : memref<16x32xf32, #tpu.memory_space<vmem>>, vector<16x32xf32>
    %4 = arith.truncf %3 : vector<16x32xf32> to vector<16x32xbf16>
    %c0_2 = arith.constant 0 : index
    %c0_3 = arith.constant 0 : index
    %5 = vector.load %arg2[%c0_2, %c0_3] : memref<16x16xf32, #tpu.memory_space<vmem>>, vector<16x16xf32>
    %c0_4 = arith.constant 0 : index
    %c0_5 = arith.constant 0 : index
    %c0_6 = arith.constant 0 : index
    %6 = vector.load %arg4[%c0_4, %c0_5, %c0_6] : memref<1x32x96xbf16, #tpu.memory_space<vmem>>, vector<1x32x96xbf16>
    %7 = vector.shape_cast %6 : vector<1x32x96xbf16> to vector<32x96xbf16>
    %cst = arith.constant dense<0.000000e+00> : vector<16x96xf32>
    %8 = tpu.matmul %4, %7, %cst {dimension_numbers = #tpu.dot_dimension_numbers<[1], [0], [0], [1], [0, 0, 1, 1], [], []>} : vector<16x32xbf16>, vector<32x96xbf16>, vector<16x96xf32> -> vector<16x96xf32>
    %c0_7 = arith.constant 0 : index
    %c0_8 = arith.constant 0 : index
    %c0_9 = arith.constant 0 : index
    %9 = vector.load %arg5[%c0_7, %c0_8, %c0_9] : memref<1x1x96xf32, #tpu.memory_space<vmem>>, vector<1x1x96xf32>
    %10 = vector.shape_cast %9 : vector<1x1x96xf32> to vector<1x96xf32>
    %11 = vector.broadcast %10 : vector<1x96xf32> to vector<16x96xf32>
    %12 = arith.addf %8, %11 : vector<16x96xf32>
    %13 = vector.extract_strided_slice %12 {offsets = [0, 0], sizes = [16, 16], strides = [1, 1]} : vector<16x96xf32> to vector<16x16xf32>
    %14 = arith.truncf %13 : vector<16x16xf32> to vector<16x16xbf16>
    %15 = vector.extract_strided_slice %12 {offsets = [0, 32], sizes = [16, 16], strides = [1, 1]} : vector<16x96xf32> to vector<16x16xf32>
    %16 = arith.truncf %15 : vector<16x16xf32> to vector<16x16xbf16>
    %17 = vector.extract_strided_slice %12 {offsets = [0, 64], sizes = [16, 16], strides = [1, 1]} : vector<16x96xf32> to vector<16x16xf32>
    %18 = arith.truncf %17 : vector<16x16xf32> to vector<16x16xbf16>
    %cst_10 = arith.constant dense<0.000000e+00> : vector<16x16xf32>
    %19 = tpu.matmul %14, %16, %cst_10 {dimension_numbers = #tpu.dot_dimension_numbers<[1], [1], [0], [0], [0, 0, 1, 0], [], []>} : vector<16x16xbf16>, vector<16x16xbf16>, vector<16x16xf32> -> vector<16x16xf32>
    %cst_11 = arith.constant 2.500000e-01 : f32
    %20 = vector.broadcast %cst_11 : f32 to vector<16x16xf32>
    %21 = arith.mulf %19, %20 : vector<16x16xf32>
    %22 = arith.addf %21, %5 : vector<16x16xf32>
    %cst_12 = arith.constant dense<0xFF800000> : vector<16xf32>
    %23 = vector.multi_reduction <maximumf>, %22, %cst_12 [1] : vector<16x16xf32> to vector<16xf32>
    %24 = vector.shape_cast %23 : vector<16xf32> to vector<16x1xf32>
    %25 = vector.broadcast %24 : vector<16x1xf32> to vector<16x16xf32>
    %26 = arith.subf %22, %25 : vector<16x16xf32>
    %27 = math.exp %26 : vector<16x16xf32>
    %cst_13 = arith.constant dense<0.000000e+00> : vector<16xf32>
    %28 = vector.multi_reduction <add>, %27, %cst_13 [1] : vector<16x16xf32> to vector<16xf32>
    %29 = vector.shape_cast %28 : vector<16xf32> to vector<16x1xf32>
    %30 = tpu.reciprocal %29 {approx = true} : vector<16x1xf32> -> vector<16x1xf32>
    %31 = vector.broadcast %30 : vector<16x1xf32> to vector<16x16xf32>
    %32 = arith.mulf %27, %31 : vector<16x16xf32>
    %33 = arith.truncf %32 : vector<16x16xf32> to vector<16x16xbf16>
    %cst_14 = arith.constant dense<0.000000e+00> : vector<16x16xf32>
    %34 = tpu.matmul %33, %18, %cst_14 {dimension_numbers = #tpu.dot_dimension_numbers<[1], [0], [0], [1], [0, 0, 1, 1], [], []>} : vector<16x16xbf16>, vector<16x16xbf16>, vector<16x16xf32> -> vector<16x16xf32>
    %35 = vector.extract_strided_slice %12 {offsets = [0, 16], sizes = [16, 16], strides = [1, 1]} : vector<16x96xf32> to vector<16x16xf32>
    %36 = arith.truncf %35 : vector<16x16xf32> to vector<16x16xbf16>
    %37 = vector.extract_strided_slice %12 {offsets = [0, 48], sizes = [16, 16], strides = [1, 1]} : vector<16x96xf32> to vector<16x16xf32>
    %38 = arith.truncf %37 : vector<16x16xf32> to vector<16x16xbf16>
    %39 = vector.extract_strided_slice %12 {offsets = [0, 80], sizes = [16, 16], strides = [1, 1]} : vector<16x96xf32> to vector<16x16xf32>
    %40 = arith.truncf %39 : vector<16x16xf32> to vector<16x16xbf16>
    %cst_15 = arith.constant dense<0.000000e+00> : vector<16x16xf32>
    %41 = tpu.matmul %36, %38, %cst_15 {dimension_numbers = #tpu.dot_dimension_numbers<[1], [1], [0], [0], [0, 0, 1, 0], [], []>} : vector<16x16xbf16>, vector<16x16xbf16>, vector<16x16xf32> -> vector<16x16xf32>
    %cst_16 = arith.constant 2.500000e-01 : f32
    %42 = vector.broadcast %cst_16 : f32 to vector<16x16xf32>
    %43 = arith.mulf %41, %42 : vector<16x16xf32>
    %44 = arith.addf %43, %5 : vector<16x16xf32>
    %cst_17 = arith.constant dense<0xFF800000> : vector<16xf32>
    %45 = vector.multi_reduction <maximumf>, %44, %cst_17 [1] : vector<16x16xf32> to vector<16xf32>
    %46 = vector.shape_cast %45 : vector<16xf32> to vector<16x1xf32>
    %47 = vector.broadcast %46 : vector<16x1xf32> to vector<16x16xf32>
    %48 = arith.subf %44, %47 : vector<16x16xf32>
    %49 = math.exp %48 : vector<16x16xf32>
    %cst_18 = arith.constant dense<0.000000e+00> : vector<16xf32>
    %50 = vector.multi_reduction <add>, %49, %cst_18 [1] : vector<16x16xf32> to vector<16xf32>
    %51 = vector.shape_cast %50 : vector<16xf32> to vector<16x1xf32>
    %52 = tpu.reciprocal %51 {approx = true} : vector<16x1xf32> -> vector<16x1xf32>
    %53 = vector.broadcast %52 : vector<16x1xf32> to vector<16x16xf32>
    %54 = arith.mulf %49, %53 : vector<16x16xf32>
    %55 = arith.truncf %54 : vector<16x16xf32> to vector<16x16xbf16>
    %cst_19 = arith.constant dense<0.000000e+00> : vector<16x16xf32>
    %56 = tpu.matmul %55, %40, %cst_19 {dimension_numbers = #tpu.dot_dimension_numbers<[1], [0], [0], [1], [0, 0, 1, 1], [], []>} : vector<16x16xbf16>, vector<16x16xbf16>, vector<16x16xf32> -> vector<16x16xf32>
    %57 = tpu.concatenate %34, %56 in 1 : vector<16x16xf32>, vector<16x16xf32> -> vector<16x32xf32>
    %58 = arith.truncf %57 : vector<16x32xf32> to vector<16x32xbf16>
    %c0_20 = arith.constant 0 : index
    %c0_21 = arith.constant 0 : index
    %c0_22 = arith.constant 0 : index
    %59 = vector.load %arg6[%c0_20, %c0_21, %c0_22] : memref<1x32x32xbf16, #tpu.memory_space<vmem>>, vector<1x32x32xbf16>
    %60 = vector.shape_cast %59 : vector<1x32x32xbf16> to vector<32x32xbf16>
    %cst_23 = arith.constant dense<0.000000e+00> : vector<16x32xf32>
    %61 = tpu.matmul %58, %60, %cst_23 {dimension_numbers = #tpu.dot_dimension_numbers<[1], [0], [0], [1], [0, 0, 1, 1], [], []>} : vector<16x32xbf16>, vector<32x32xbf16>, vector<16x32xf32> -> vector<16x32xf32>
    %c0_24 = arith.constant 0 : index
    %c0_25 = arith.constant 0 : index
    %c0_26 = arith.constant 0 : index
    %62 = vector.load %arg7[%c0_24, %c0_25, %c0_26] : memref<1x1x32xf32, #tpu.memory_space<vmem>>, vector<1x1x32xf32>
    %63 = vector.shape_cast %62 : vector<1x1x32xf32> to vector<1x32xf32>
    %64 = vector.broadcast %63 : vector<1x32xf32> to vector<16x32xf32>
    %65 = arith.addf %61, %64 : vector<16x32xf32>
    %66 = arith.addf %3, %65 : vector<16x32xf32>
    %c0_27 = arith.constant 0 : index
    %c0_28 = arith.constant 0 : index
    %c0_29 = arith.constant 0 : index
    %67 = vector.load %arg8[%c0_27, %c0_28, %c0_29] : memref<1x1x32xf32, #tpu.memory_space<vmem>>, vector<1x1x32xf32>
    %68 = vector.shape_cast %67 : vector<1x1x32xf32> to vector<1x32xf32>
    %c0_30 = arith.constant 0 : index
    %c0_31 = arith.constant 0 : index
    %c0_32 = arith.constant 0 : index
    %69 = vector.load %arg9[%c0_30, %c0_31, %c0_32] : memref<1x1x32xf32, #tpu.memory_space<vmem>>, vector<1x1x32xf32>
    %70 = vector.shape_cast %69 : vector<1x1x32xf32> to vector<1x32xf32>
    %cst_33 = arith.constant dense<0.000000e+00> : vector<16xf32>
    %71 = vector.multi_reduction <add>, %66, %cst_33 [1] : vector<16x32xf32> to vector<16xf32>
    %72 = vector.shape_cast %71 : vector<16xf32> to vector<16x1xf32>
    %cst_34 = arith.constant 3.200000e+01 : f32
    %73 = vector.broadcast %cst_34 : f32 to vector<16x1xf32>
    %74 = arith.divf %72, %73 : vector<16x1xf32>
    %75 = vector.broadcast %74 : vector<16x1xf32> to vector<16x32xf32>
    %76 = arith.subf %66, %75 : vector<16x32xf32>
    %77 = arith.mulf %76, %76 : vector<16x32xf32>
    %cst_35 = arith.constant dense<0.000000e+00> : vector<16xf32>
    %78 = vector.multi_reduction <add>, %77, %cst_35 [1] : vector<16x32xf32> to vector<16xf32>
    %79 = vector.shape_cast %78 : vector<16xf32> to vector<16x1xf32>
    %cst_36 = arith.constant 3.200000e+01 : f32
    %80 = vector.broadcast %cst_36 : f32 to vector<16x1xf32>
    %81 = arith.divf %79, %80 : vector<16x1xf32>
    %82 = vector.broadcast %74 : vector<16x1xf32> to vector<16x32xf32>
    %83 = arith.subf %66, %82 : vector<16x32xf32>
    %cst_37 = arith.constant 9.99999996E-13 : f32
    %84 = vector.broadcast %cst_37 : f32 to vector<16x1xf32>
    %85 = arith.addf %81, %84 : vector<16x1xf32>
    %86 = math.rsqrt %85 : vector<16x1xf32>
    %87 = vector.broadcast %86 : vector<16x1xf32> to vector<16x32xf32>
    %88 = arith.mulf %83, %87 : vector<16x32xf32>
    %89 = vector.broadcast %68 : vector<1x32xf32> to vector<16x32xf32>
    %90 = arith.mulf %88, %89 : vector<16x32xf32>
    %91 = vector.broadcast %70 : vector<1x32xf32> to vector<16x32xf32>
    %92 = arith.addf %90, %91 : vector<16x32xf32>
    %93 = arith.truncf %92 : vector<16x32xf32> to vector<16x32xbf16>
    %c0_38 = arith.constant 0 : index
    %c0_39 = arith.constant 0 : index
    %c0_40 = arith.constant 0 : index
    %94 = vector.load %arg10[%c0_38, %c0_39, %c0_40] : memref<1x32x64xbf16, #tpu.memory_space<vmem>>, vector<1x32x64xbf16>
    %95 = vector.shape_cast %94 : vector<1x32x64xbf16> to vector<32x64xbf16>
    %cst_41 = arith.constant dense<0.000000e+00> : vector<16x64xf32>
    %96 = tpu.matmul %93, %95, %cst_41 {dimension_numbers = #tpu.dot_dimension_numbers<[1], [0], [0], [1], [0, 0, 1, 1], [], []>} : vector<16x32xbf16>, vector<32x64xbf16>, vector<16x64xf32> -> vector<16x64xf32>
    %c0_42 = arith.constant 0 : index
    %c0_43 = arith.constant 0 : index
    %c0_44 = arith.constant 0 : index
    %97 = vector.load %arg11[%c0_42, %c0_43, %c0_44] : memref<1x1x64xf32, #tpu.memory_space<vmem>>, vector<1x1x64xf32>
    %98 = vector.shape_cast %97 : vector<1x1x64xf32> to vector<1x64xf32>
    %99 = vector.broadcast %98 : vector<1x64xf32> to vector<16x64xf32>
    %100 = arith.addf %96, %99 : vector<16x64xf32>
    %101 = arith.mulf %100, %100 : vector<16x64xf32>
    %102 = arith.mulf %100, %101 : vector<16x64xf32>
    %cst_45 = arith.constant 4.471500e-02 : f32
    %103 = vector.broadcast %cst_45 : f32 to vector<16x64xf32>
    %104 = arith.mulf %103, %102 : vector<16x64xf32>
    %105 = arith.addf %100, %104 : vector<16x64xf32>
    %cst_46 = arith.constant 0.797884583 : f32
    %106 = vector.broadcast %cst_46 : f32 to vector<16x64xf32>
    %107 = arith.mulf %106, %105 : vector<16x64xf32>
    %108 = math.tanh %107 : vector<16x64xf32>
    %cst_47 = arith.constant 1.000000e+00 : f32
    %109 = vector.broadcast %cst_47 : f32 to vector<16x64xf32>
    %110 = arith.addf %109, %108 : vector<16x64xf32>
    %cst_48 = arith.constant 5.000000e-01 : f32
    %111 = vector.broadcast %cst_48 : f32 to vector<16x64xf32>
    %112 = arith.mulf %111, %110 : vector<16x64xf32>
    %113 = arith.mulf %100, %112 : vector<16x64xf32>
    %114 = arith.truncf %113 : vector<16x64xf32> to vector<16x64xbf16>
    %c0_49 = arith.constant 0 : index
    %c0_50 = arith.constant 0 : index
    %c0_51 = arith.constant 0 : index
    %115 = vector.load %arg12[%c0_49, %c0_50, %c0_51] : memref<1x64x32xbf16, #tpu.memory_space<vmem>>, vector<1x64x32xbf16>
    %116 = vector.shape_cast %115 : vector<1x64x32xbf16> to vector<64x32xbf16>
    %cst_52 = arith.constant dense<0.000000e+00> : vector<16x32xf32>
    %117 = tpu.matmul %114, %116, %cst_52 {dimension_numbers = #tpu.dot_dimension_numbers<[1], [0], [0], [1], [0, 0, 1, 1], [], []>} : vector<16x64xbf16>, vector<64x32xbf16>, vector<16x32xf32> -> vector<16x32xf32>
    %c0_53 = arith.constant 0 : index
    %c0_54 = arith.constant 0 : index
    %c0_55 = arith.constant 0 : index
    %118 = vector.load %arg13[%c0_53, %c0_54, %c0_55] : memref<1x1x32xf32, #tpu.memory_space<vmem>>, vector<1x1x32xf32>
    %119 = vector.shape_cast %118 : vector<1x1x32xf32> to vector<1x32xf32>
    %120 = vector.broadcast %119 : vector<1x32xf32> to vector<16x32xf32>
    %121 = arith.addf %117, %120 : vector<16x32xf32>
    %122 = arith.addf %92, %121 : vector<16x32xf32>
    %c0_56 = arith.constant 0 : index
    %c0_57 = arith.constant 0 : index
    %c0_58 = arith.constant 0 : index
    %123 = vector.load %arg14[%c0_56, %c0_57, %c0_58] : memref<1x1x32xf32, #tpu.memory_space<vmem>>, vector<1x1x32xf32>
    %124 = vector.shape_cast %123 : vector<1x1x32xf32> to vector<1x32xf32>
    %c0_59 = arith.constant 0 : index
    %c0_60 = arith.constant 0 : index
    %c0_61 = arith.constant 0 : index
    %125 = vector.load %arg15[%c0_59, %c0_60, %c0_61] : memref<1x1x32xf32, #tpu.memory_space<vmem>>, vector<1x1x32xf32>
    %126 = vector.shape_cast %125 : vector<1x1x32xf32> to vector<1x32xf32>
    %cst_62 = arith.constant dense<0.000000e+00> : vector<16xf32>
    %127 = vector.multi_reduction <add>, %122, %cst_62 [1] : vector<16x32xf32> to vector<16xf32>
    %128 = vector.shape_cast %127 : vector<16xf32> to vector<16x1xf32>
    %cst_63 = arith.constant 3.200000e+01 : f32
    %129 = vector.broadcast %cst_63 : f32 to vector<16x1xf32>
    %130 = arith.divf %128, %129 : vector<16x1xf32>
    %131 = vector.broadcast %130 : vector<16x1xf32> to vector<16x32xf32>
    %132 = arith.subf %122, %131 : vector<16x32xf32>
    %133 = arith.mulf %132, %132 : vector<16x32xf32>
    %cst_64 = arith.constant dense<0.000000e+00> : vector<16xf32>
    %134 = vector.multi_reduction <add>, %133, %cst_64 [1] : vector<16x32xf32> to vector<16xf32>
    %135 = vector.shape_cast %134 : vector<16xf32> to vector<16x1xf32>
    %cst_65 = arith.constant 3.200000e+01 : f32
    %136 = vector.broadcast %cst_65 : f32 to vector<16x1xf32>
    %137 = arith.divf %135, %136 : vector<16x1xf32>
    %138 = vector.broadcast %130 : vector<16x1xf32> to vector<16x32xf32>
    %139 = arith.subf %122, %138 : vector<16x32xf32>
    %cst_66 = arith.constant 9.99999996E-13 : f32
    %140 = vector.broadcast %cst_66 : f32 to vector<16x1xf32>
    %141 = arith.addf %137, %140 : vector<16x1xf32>
    %142 = math.rsqrt %141 : vector<16x1xf32>
    %143 = vector.broadcast %142 : vector<16x1xf32> to vector<16x32xf32>
    %144 = arith.mulf %139, %143 : vector<16x32xf32>
    %145 = vector.broadcast %124 : vector<1x32xf32> to vector<16x32xf32>
    %146 = arith.mulf %144, %145 : vector<16x32xf32>
    %147 = vector.broadcast %126 : vector<1x32xf32> to vector<16x32xf32>
    %148 = arith.addf %146, %147 : vector<16x32xf32>
    %c0_67 = arith.constant 0 : index
    %c0_68 = arith.constant 0 : index
    %149 = vector.load %arg17[%c0_67, %c0_68] : memref<16x32xf32, #tpu.memory_space<vmem>>, vector<16x32xf32>
    tpu.vector_store %arg17[%c0_67, %c0_68], %148 {strides = array<i32>} : memref<16x32xf32, #tpu.memory_space<vmem>>, vector<16x32xf32>,
    %c1_i32 = arith.constant 1 : i32
    %150 = arith.cmpi eq, %arg0, %c1_i32 : i32
    %151 = arith.extui %150 : i1 to i32
    %c0_i32_69 = arith.constant 0 : i32
    %152 = arith.cmpi ne, %151, %c0_i32_69 : i32
    scf.if %152 {
      %153 = vector.shape_cast %148 : vector<16x32xf32> to vector<2x8x32xf32>
      %c0_70 = arith.constant 0 : index
      %c0_71 = arith.constant 0 : index
      %154 = vector.load %arg3[%c0_70, %c0_71] : memref<16x1xf32, #tpu.memory_space<vmem>>, vector<16x1xf32>
      %155 = vector.shape_cast %154 : vector<16x1xf32> to vector<2x8x1xf32>
      %cst_72 = arith.constant 0.000000e+00 : f32
      %156 = vector.broadcast %cst_72 : f32 to vector<2x8x1xf32>
      %157 = arith.cmpf oeq, %155, %156 : vector<2x8x1xf32>
      %cst_73 = arith.constant -1.000000e+09 : f32
      %158 = vector.shape_cast %157 : vector<2x8x1xi1> to vector<2x8x1xi1>
      %159 = vector.broadcast %158 : vector<2x8x1xi1> to vector<2x8x32xi1>
      %160 = vector.broadcast %cst_73 : f32 to vector<2x8x32xf32>
      %161 = arith.select %159, %160, %153 : vector<2x8x32xi1>, vector<2x8x32xf32>
      %cst_74 = arith.constant dense<0xFF800000> : vector<2x32xf32>
      %162 = vector.multi_reduction <maximumf>, %161, %cst_74 [1] : vector<2x8x32xf32> to vector<2x32xf32>
      %c0_75 = arith.constant 0 : index
      %c0_76 = arith.constant 0 : index
      %163 = vector.load %arg16[%c0_75, %c0_76] : memref<2x32xf32, #tpu.memory_space<vmem>>, vector<2x32xf32>
      tpu.vector_store %arg16[%c0_75, %c0_76], %162 {strides = array<i32>} : memref<2x32xf32, #tpu.memory_space<vmem>>, vector<2x32xf32>,
    } else {
    }
    return
  }
  func.func @transform_0(%arg0: i32) -> (i32, i32) {
    %c0_i32 = arith.constant 0 : i32
    %c0_i32_0 = arith.constant 0 : i32
    %c0_i32_1 = arith.constant 0 : i32
    return %c0_i32, %c0_i32_0 : i32, i32
  }
  func.func @transform_1(%arg0: i32) -> (i32, i32) {
    %c0_i32 = arith.constant 0 : i32
    %c0_i32_0 = arith.constant 0 : i32
    %c0_i32_1 = arith.constant 0 : i32
    return %c0_i32, %c0_i32_0 : i32, i32
  }
  func.func @transform_2(%arg0: i32) -> (i32, i32) {
    %c0_i32 = arith.constant 0 : i32
    %c0_i32_0 = arith.constant 0 : i32
    %c0_i32_1 = arith.constant 0 : i32
    return %c0_i32, %c0_i32_0 : i32, i32
  }
  func.func @transform_3(%arg0: i32) -> (i32, i32, i32) {
    %c0_i32 = arith.constant 0 : i32
    %c0_i32_0 = arith.constant 0 : i32
    %c0_i32_1 = arith.constant 0 : i32
    return %arg0, %c0_i32, %c0_i32_0 : i32, i32, i32
  }
  func.func @transform_4(%arg0: i32) -> (i32, i32, i32) {
    %c0_i32 = arith.constant 0 : i32
    %c0_i32_0 = arith.constant 0 : i32
    %c0_i32_1 = arith.constant 0 : i32
    return %arg0, %c0_i32, %c0_i32_0 : i32, i32, i32
  }
  func.func @transform_5(%arg0: i32) -> (i32, i32, i32) {
    %c0_i32 = arith.constant 0 : i32
    %c0_i32_0 = arith.constant 0 : i32
    %c0_i32_1 = arith.constant 0 : i32
    return %arg0, %c0_i32, %c0_i32_0 : i32, i32, i32
  }
  func.func @transform_6(%arg0: i32) -> (i32, i32, i32) {
    %c0_i32 = arith.constant 0 : i32
    %c0_i32_0 = arith.constant 0 : i32
    %c0_i32_1 = arith.constant 0 : i32
    return %arg0, %c0_i32, %c0_i32_0 : i32, i32, i32
  }
  func.func @transform_7(%arg0: i32) -> (i32, i32, i32) {
    %c0_i32 = arith.constant 0 : i32
    %c0_i32_0 = arith.constant 0 : i32
    %c0_i32_1 = arith.constant 0 : i32
    return %arg0, %c0_i32, %c0_i32_0 : i32, i32, i32
  }
  func.func @transform_8(%arg0: i32) -> (i32, i32, i32) {
    %c0_i32 = arith.constant 0 : i32
    %c0_i32_0 = arith.constant 0 : i32
    %c0_i32_1 = arith.constant 0 : i32
    return %arg0, %c0_i32, %c0_i32_0 : i32, i32, i32
  }
  func.func @transform_9(%arg0: i32) -> (i32, i32, i32) {
    %c0_i32 = arith.constant 0 : i32
    %c0_i32_0 = arith.constant 0 : i32
    %c0_i32_1 = arith.constant 0 : i32
    return %arg0, %c0_i32, %c0_i32_0 : i32, i32, i32
  }
  func.func @transform_10(%arg0: i32) -> (i32, i32, i32) {
    %c0_i32 = arith.constant 0 : i32
    %c0_i32_0 = arith.constant 0 : i32
    %c0_i32_1 = arith.constant 0 : i32
    return %arg0, %c0_i32, %c0_i32_0 : i32, i32, i32
  }
  func.func @transform_11(%arg0: i32) -> (i32, i32, i32) {
    %c0_i32 = arith.constant 0 : i32
    %c0_i32_0 = arith.constant 0 : i32
    %c0_i32_1 = arith.constant 0 : i32
    return %arg0, %c0_i32, %c0_i32_0 : i32, i32, i32
  }
  func.func @transform_12(%arg0: i32) -> (i32, i32, i32) {
    %c0_i32 = arith.constant 0 : i32
    %c0_i32_0 = arith.constant 0 : i32
    %c0_i32_1 = arith.constant 0 : i32
    return %arg0, %c0_i32, %c0_i32_0 : i32, i32, i32
  }
  func.func @transform_13(%arg0: i32) -> (i32, i32, i32) {
    %c0_i32 = arith.constant 0 : i32
    %c0_i32_0 = arith.constant 0 : i32
    %c0_i32_1 = arith.constant 0 : i32
    return %arg0, %c0_i32, %c0_i32_0 : i32, i32, i32
  }
  func.func @transform_14(%arg0: i32) -> (i32, i32, i32) {
    %c0_i32 = arith.constant 0 : i32
    %c0_i32_0 = arith.constant 0 : i32
    %c0_i32_1 = arith.constant 0 : i32
    return %arg0, %c0_i32, %c0_i32_0 : i32, i32, i32
  }
  func.func @transform_15(%arg0: i32) -> (i32, i32) {
    %c0_i32 = arith.constant 0 : i32
    %c0_i32_0 = arith.constant 0 : i32
    %c0_i32_1 = arith.constant 0 : i32
    return %c0_i32, %c0_i32_0 : i32, i32
  }
}

</mosaic_0001>

<llo_original>
// kernel: tpu_custom_call.1
$region0: #{tpu_custom_call.1}
  #allocation0 [shape = 'u32[]', space=smem, size = 0x4, offset = 0x4, fixed_abs, tag = 'smem constant byte address 0x4 - core index']
  #allocation1 [shape = 'u32[144,128]{1,0:T(1,128)}', space=vmem, size = 0x12000, scoped, tag = 'internal scratch']
  #allocation2 [shape = 'f32[16,32]{1,0:T(8,128)}', space=vmem, size = 0x2000, scoped, tag = 'scratch operand']
  %s0 = inlined_call_operand.vmem [shape: f32[16,32], index: 0, kind: input, shape index: {}]
  %s1 = inlined_call_operand.hbm [shape: f32[16,16], index: 1, kind: input, shape index: {}]
  %s2 = inlined_call_operand.vmem [shape: f32[16,1], index: 2, kind: input, shape index: {}]
  %s3 = inlined_call_operand.vmem [shape: bf16[2,32,96], index: 3, kind: input, shape index: {}]
  %s4 = inlined_call_operand.vmem [shape: f32[2,1,96], index: 4, kind: input, shape index: {}]
  %s5 = inlined_call_operand.vmem [shape: bf16[2,32,32], index: 5, kind: input, shape index: {}]
  %s6 = inlined_call_operand.vmem [shape: f32[2,1,32], index: 6, kind: input, shape index: {}]
  %s7 = inlined_call_operand.vmem [shape: f32[2,1,32], index: 7, kind: input, shape index: {}]
  %s8 = inlined_call_operand.vmem [shape: f32[2,1,32], index: 8, kind: input, shape index: {}]
  %s9 = inlined_call_operand.vmem [shape: bf16[2,32,64], index: 9, kind: input, shape index: {}]
  %s10 = inlined_call_operand.vmem [shape: f32[2,1,64], index: 10, kind: input, shape index: {}]
  %s11 = inlined_call_operand.vmem [shape: bf16[2,64,32], index: 11, kind: input, shape index: {}]
  %s12 = inlined_call_operand.vmem [shape: f32[2,1,32], index: 12, kind: input, shape index: {}]
  %s13 = inlined_call_operand.vmem [shape: f32[2,1,32], index: 13, kind: input, shape index: {}]
  %s14 = inlined_call_operand.vmem [shape: f32[2,1,32], index: 14, kind: input, shape index: {}]
  %s15 = inlined_call_operand.hbm [shape: f32[2,32], index: 15, kind: output, shape index: {}]
  %s16 = sld [smem:[#allocation0]]
  $region105: #{tpu_custom_call.1} parent=0
    _
  %s18 = ssub.s32 1, %s16
  %s19 = scalar_select 0, %s18, %s16
  $region1: #{tpu_custom_call.1} parent=0
    #allocation3 [shape = 'u8[8192]{0}', space=vmem, size = 0x2000, scoped, tag = 'input window, operand 1, single buffered']
    #allocation4 [shape = 's32[2]{0}', space=sflag, size = 0x8, scoped, tag = 'scoped memory for tpu_custom_call.1']
    #allocation5 [shape = 's32[2]{0}', space=sflag, size = 0x8, scoped, tag = 'scoped memory for tpu_custom_call.1']
    #allocation6 [shape = 'u8[1024]{0}', space=vmem, size = 0x400, scoped, tag = 'output window, operand 0, single buffered']
    %20 = vsyncpa [#allocation4], 0
    %21 = vsyncpa [#allocation5], 0
    loop: start=0, step=1, limit=4
    $region2: #{tpu_custom_call.1} parent=1 // loop_pre_header
      _
    $region3: #{tpu_custom_call.1} parent=1 // loop_header
      %s23 = sphi 0, %s27
      %p24 = scmp.ge.s32.totalorder %s23, 4
      %s31 = sphi 0, %s31
      %s33 = sphi 0, %s31
      %s34 = sphi 0, %s33
      %s48 = sphi 0, %s34
      %s52 = sphi 0, %s52
      %s54 = sphi 0, %s52
      %s55 = sphi 0, %s54
      %s69 = sphi 0, %s55
      %s73 = sphi 0, %s73
      %s75 = sphi 0, %s73
      %s76 = sphi 0, %s75
      %s90 = sphi 0, %s76
      %s96 = sphi 0, %s98
      %s99 = sphi 0, %s96
      %s100 = sphi 0, %s99
      %s116 = sphi 0, %s100
      %s122 = sphi 0, %s124
      %s125 = sphi 0, %s122
      %s126 = sphi 0, %s125
      %s142 = sphi 0, %s126
      %s148 = sphi 0, %s150
      %s151 = sphi 0, %s148
      %s152 = sphi 0, %s151
      %s168 = sphi 0, %s152
      %s174 = sphi 0, %s176
      %s177 = sphi 0, %s174
      %s178 = sphi 0, %s177
      %s194 = sphi 0, %s178
      %s200 = sphi 0, %s202
      %s203 = sphi 0, %s200
      %s204 = sphi 0, %s203
      %s220 = sphi 0, %s204
      %s226 = sphi 0, %s228
      %s229 = sphi 0, %s226
      %s230 = sphi 0, %s229
      %s246 = sphi 0, %s230
      %s252 = sphi 0, %s254
      %s255 = sphi 0, %s252
      %s256 = sphi 0, %s255
      %s272 = sphi 0, %s256
      %s278 = sphi 0, %s280
      %s281 = sphi 0, %s278
      %s282 = sphi 0, %s281
      %s298 = sphi 0, %s282
      %s304 = sphi 0, %s306
      %s307 = sphi 0, %s304
      %s308 = sphi 0, %s307
      %s324 = sphi 0, %s308
      %s330 = sphi 0, %s332
      %s333 = sphi 0, %s330
      %s334 = sphi 0, %s333
      %s350 = sphi 0, %s334
      %s356 = sphi 0, %s358
      %s359 = sphi 0, %s356
      %s360 = sphi 0, %s359
      %s376 = sphi 0, %s360
      %s382 = sphi 0, %s384
      %s385 = sphi 0, %s382
      %s386 = sphi 0, %s385
      %s402 = sphi 0, %s386
      %s406 = sphi 0, %s406
      %s408 = sphi 0, %s406
      %s409 = sphi 0, %s408
      %s423 = sphi 0, %s409
    $region4: #{tpu_custom_call.1} parent=1 // loop_header_branch
      %26 = sbr.rel (%p24) target = $region8
    $region5: #{tpu_custom_call.1} parent=1 // loop_body
      %s28 = ssub.s32 %s23, 1
      %s29 = ssub.s32 %s23, 2
      %s30 = sadd.s32 %s23, 1
      %s32 = sadd.s32 %s31, 1
      %p35 = scmp.eq.s32.totalorder %s23, 1
      %p36 = scmp.ne.s32.totalorder %s31, %s33
      %p37 = scmp.eq.s32.totalorder %s23, 0
      %p38 = por %p36, %p37
      %p39 = scmp.ne.s32.totalorder %s31, %s33
      %p40 = scmp.eq.s32.totalorder %s28, 1
      %p41 = por %p39, %p40
      %p42 = scmp.ne.s32.totalorder %s33, %s34
      %p43 = scmp.eq.s32.totalorder %s28, 0
      %p44 = por %p42, %p43
      %p45 = scmp.ne.s32.totalorder %s33, %s34
      %p46 = scmp.eq.s32.totalorder %s29, 1
      %p47 = por %p45, %p46
      %p49 = scmp.ne.s32.totalorder %s34, %s48
      %p50 = scmp.eq.s32.totalorder %s29, 0
      %p51 = por %p49, %p50
      %s53 = sadd.s32 %s52, 1
      %p56 = scmp.eq.s32.totalorder %s23, 1
      %p57 = scmp.ne.s32.totalorder %s52, %s54
      %p58 = scmp.eq.s32.totalorder %s23, 0
      %p59 = por %p57, %p58
      %p60 = scmp.ne.s32.totalorder %s52, %s54
      %p61 = scmp.eq.s32.totalorder %s28, 1
      %p62 = por %p60, %p61
      %p63 = scmp.ne.s32.totalorder %s54, %s55
      %p64 = scmp.eq.s32.totalorder %s28, 0
      %p65 = por %p63, %p64
      %p66 = scmp.ne.s32.totalorder %s54, %s55
      %p67 = scmp.eq.s32.totalorder %s29, 1
      %p68 = por %p66, %p67
      %p70 = scmp.ne.s32.totalorder %s55, %s69
      %p71 = scmp.eq.s32.totalorder %s29, 0
      %p72 = por %p70, %p71
      %s74 = sadd.s32 %s73, 1
      %p77 = scmp.eq.s32.totalorder %s23, 1
      %p78 = scmp.ne.s32.totalorder %s73, %s75
      %p79 = scmp.eq.s32.totalorder %s23, 0
      %p80 = por %p78, %p79
      %p81 = scmp.ne.s32.totalorder %s73, %s75
      %p82 = scmp.eq.s32.totalorder %s28, 1
      %p83 = por %p81, %p82
      %p84 = scmp.ne.s32.totalorder %s75, %s76
      %p85 = scmp.eq.s32.totalorder %s28, 0
      %p86 = por %p84, %p85
      %p87 = scmp.ne.s32.totalorder %s75, %s76
      %p88 = scmp.eq.s32.totalorder %s29, 1
      %p89 = por %p87, %p88
      %p91 = scmp.ne.s32.totalorder %s76, %s90
      %p92 = scmp.eq.s32.totalorder %s29, 0
      %p93 = por %p91, %p92
      %s94 = ssub.s32 %s23, %s30
      %p95 = scmp.eq.s32.totalorder %s94, 0
      %s97 = sadd.s32 %s96, 1
      %s98 = scalar_select %p95, %s96, %s97
      %p101 = pneg %p95
      %p102 = scmp.eq.s32.totalorder %s23, 1
      %p103 = por %p101, %p102
      %p104 = scmp.ne.s32.totalorder %s96, %s99
      %p105 = scmp.eq.s32.totalorder %s23, 0
      %p106 = por %p104, %p105
      %p107 = scmp.ne.s32.totalorder %s96, %s99
      %p108 = scmp.eq.s32.totalorder %s28, 1
      %p109 = por %p107, %p108
      %p110 = scmp.ne.s32.totalorder %s99, %s100
      %p111 = scmp.eq.s32.totalorder %s28, 0
      %p112 = por %p110, %p111
      %p113 = scmp.ne.s32.totalorder %s99, %s100
      %p114 = scmp.eq.s32.totalorder %s29, 1
      %p115 = por %p113, %p114
      %p117 = scmp.ne.s32.totalorder %s100, %s116
      %p118 = scmp.eq.s32.totalorder %s29, 0
      %p119 = por %p117, %p118
      %s120 = ssub.s32 %s23, %s30
      %p121 = scmp.eq.s32.totalorder %s120, 0
      %s123 = sadd.s32 %s122, 1
      %s124 = scalar_select %p121, %s122, %s123
      %p127 = pneg %p121
      %p128 = scmp.eq.s32.totalorder %s23, 1
      %p129 = por %p127, %p128
      %p130 = scmp.ne.s32.totalorder %s122, %s125
      %p131 = scmp.eq.s32.totalorder %s23, 0
      %p132 = por %p130, %p131
      %p133 = scmp.ne.s32.totalorder %s122, %s125
      %p134 = scmp.eq.s32.totalorder %s28, 1
      %p135 = por %p133, %p134
      %p136 = scmp.ne.s32.totalorder %s125, %s126
      %p137 = scmp.eq.s32.totalorder %s28, 0
      %p138 = por %p136, %p137
      %p139 = scmp.ne.s32.totalorder %s125, %s126
      %p140 = scmp.eq.s32.totalorder %s29, 1
      %p141 = por %p139, %p140
      %p143 = scmp.ne.s32.totalorder %s126, %s142
      %p144 = scmp.eq.s32.totalorder %s29, 0
      %p145 = por %p143, %p144
      %s146 = ssub.s32 %s23, %s30
      %p147 = scmp.eq.s32.totalorder %s146, 0
      %s149 = sadd.s32 %s148, 1
      %s150 = scalar_select %p147, %s148, %s149
      %p153 = pneg %p147
      %p154 = scmp.eq.s32.totalorder %s23, 1
      %p155 = por %p153, %p154
      %p156 = scmp.ne.s32.totalorder %s148, %s151
      %p157 = scmp.eq.s32.totalorder %s23, 0
      %p158 = por %p156, %p157
      %p159 = scmp.ne.s32.totalorder %s148, %s151
      %p160 = scmp.eq.s32.totalorder %s28, 1
      %p161 = por %p159, %p160
      %p162 = scmp.ne.s32.totalorder %s151, %s152
      %p163 = scmp.eq.s32.totalorder %s28, 0
      %p164 = por %p162, %p163
      %p165 = scmp.ne.s32.totalorder %s151, %s152
      %p166 = scmp.eq.s32.totalorder %s29, 1
      %p167 = por %p165, %p166
      %p169 = scmp.ne.s32.totalorder %s152, %s168
      %p170 = scmp.eq.s32.totalorder %s29, 0
      %p171 = por %p169, %p170
      %s172 = ssub.s32 %s23, %s30
      %p173 = scmp.eq.s32.totalorder %s172, 0
      %s175 = sadd.s32 %s174, 1
      %s176 = scalar_select %p173, %s174, %s175
      %p179 = pneg %p173
      %p180 = scmp.eq.s32.totalorder %s23, 1
      %p181 = por %p179, %p180
      %p182 = scmp.ne.s32.totalorder %s174, %s177
      %p183 = scmp.eq.s32.totalorder %s23, 0
      %p184 = por %p182, %p183
      %p185 = scmp.ne.s32.totalorder %s174, %s177
      %p186 = scmp.eq.s32.totalorder %s28, 1
      %p187 = por %p185, %p186
      %p188 = scmp.ne.s32.totalorder %s177, %s178
      %p189 = scmp.eq.s32.totalorder %s28, 0
      %p190 = por %p188, %p189
      %p191 = scmp.ne.s32.totalorder %s177, %s178
      %p192 = scmp.eq.s32.totalorder %s29, 1
      %p193 = por %p191, %p192
      %p195 = scmp.ne.s32.totalorder %s178, %s194
      %p196 = scmp.eq.s32.totalorder %s29, 0
      %p197 = por %p195, %p196
      %s198 = ssub.s32 %s23, %s30
      %p199 = scmp.eq.s32.totalorder %s198, 0
      %s201 = sadd.s32 %s200, 1
      %s202 = scalar_select %p199, %s200, %s201
      %p205 = pneg %p199
      %p206 = scmp.eq.s32.totalorder %s23, 1
      %p207 = por %p205, %p206
      %p208 = scmp.ne.s32.totalorder %s200, %s203
      %p209 = scmp.eq.s32.totalorder %s23, 0
      %p210 = por %p208, %p209
      %p211 = scmp.ne.s32.totalorder %s200, %s203
      %p212 = scmp.eq.s32.totalorder %s28, 1
      %p213 = por %p211, %p212
      %p214 = scmp.ne.s32.totalorder %s203, %s204
      %p215 = scmp.eq.s32.totalorder %s28, 0
      %p216 = por %p214, %p215
      %p217 = scmp.ne.s32.totalorder %s203, %s204
      %p218 = scmp.eq.s32.totalorder %s29, 1
      %p219 = por %p217, %p218
      %p221 = scmp.ne.s32.totalorder %s204, %s220
      %p222 = scmp.eq.s32.totalorder %s29, 0
      %p223 = por %p221, %p222
      %s224 = ssub.s32 %s23, %s30
      %p225 = scmp.eq.s32.totalorder %s224, 0
      %s227 = sadd.s32 %s226, 1
      %s228 = scalar_select %p225, %s226, %s227
      %p231 = pneg %p225
      %p232 = scmp.eq.s32.totalorder %s23, 1
      %p233 = por %p231, %p232
      %p234 = scmp.ne.s32.totalorder %s226, %s229
      %p235 = scmp.eq.s32.totalorder %s23, 0
      %p236 = por %p234, %p235
      %p237 = scmp.ne.s32.totalorder %s226, %s229
      %p238 = scmp.eq.s32.totalorder %s28, 1
      %p239 = por %p237, %p238
      %p240 = scmp.ne.s32.totalorder %s229, %s230
      %p241 = scmp.eq.s32.totalorder %s28, 0
      %p242 = por %p240, %p241
      %p243 = scmp.ne.s32.totalorder %s229, %s230
      %p244 = scmp.eq.s32.totalorder %s29, 1
      %p245 = por %p243, %p244
      %p247 = scmp.ne.s32.totalorder %s230, %s246
      %p248 = scmp.eq.s32.totalorder %s29, 0
      %p249 = por %p247, %p248
      %s250 = ssub.s32 %s23, %s30
      %p251 = scmp.eq.s32.totalorder %s250, 0
      %s253 = sadd.s32 %s252, 1
      %s254 = scalar_select %p251, %s252, %s253
      %p257 = pneg %p251
      %p258 = scmp.eq.s32.totalorder %s23, 1
      %p259 = por %p257, %p258
      %p260 = scmp.ne.s32.totalorder %s252, %s255
      %p261 = scmp.eq.s32.totalorder %s23, 0
      %p262 = por %p260, %p261
      %p263 = scmp.ne.s32.totalorder %s252, %s255
      %p264 = scmp.eq.s32.totalorder %s28, 1
      %p265 = por %p263, %p264
      %p266 = scmp.ne.s32.totalorder %s255, %s256
      %p267 = scmp.eq.s32.totalorder %s28, 0
      %p268 = por %p266, %p267
      %p269 = scmp.ne.s32.totalorder %s255, %s256
      %p270 = scmp.eq.s32.totalorder %s29, 1
      %p271 = por %p269, %p270
      %p273 = scmp.ne.s32.totalorder %s256, %s272
      %p274 = scmp.eq.s32.totalorder %s29, 0
      %p275 = por %p273, %p274
      %s276 = ssub.s32 %s23, %s30
      %p277 = scmp.eq.s32.totalorder %s276, 0
      %s279 = sadd.s32 %s278, 1
      %s280 = scalar_select %p277, %s278, %s279
      %p283 = pneg %p277
      %p284 = scmp.eq.s32.totalorder %s23, 1
      %p285 = por %p283, %p284
      %p286 = scmp.ne.s32.totalorder %s278, %s281
      %p287 = scmp.eq.s32.totalorder %s23, 0
      %p288 = por %p286, %p287
      %p289 = scmp.ne.s32.totalorder %s278, %s281
      %p290 = scmp.eq.s32.totalorder %s28, 1
      %p291 = por %p289, %p290
      %p292 = scmp.ne.s32.totalorder %s281, %s282
      %p293 = scmp.eq.s32.totalorder %s28, 0
      %p294 = por %p292, %p293
      %p295 = scmp.ne.s32.totalorder %s281, %s282
      %p296 = scmp.eq.s32.totalorder %s29, 1
      %p297 = por %p295, %p296
      %p299 = scmp.ne.s32.totalorder %s282, %s298
      %p300 = scmp.eq.s32.totalorder %s29, 0
      %p301 = por %p299, %p300
      %s302 = ssub.s32 %s23, %s30
      %p303 = scmp.eq.s32.totalorder %s302, 0
      %s305 = sadd.s32 %s304, 1
      %s306 = scalar_select %p303, %s304, %s305
      %p309 = pneg %p303
      %p310 = scmp.eq.s32.totalorder %s23, 1
      %p311 = por %p309, %p310
      %p312 = scmp.ne.s32.totalorder %s304, %s307
      %p313 = scmp.eq.s32.totalorder %s23, 0
      %p314 = por %p312, %p313
      %p315 = scmp.ne.s32.totalorder %s304, %s307
      %p316 = scmp.eq.s32.totalorder %s28, 1
      %p317 = por %p315, %p316
      %p318 = scmp.ne.s32.totalorder %s307, %s308
      %p319 = scmp.eq.s32.totalorder %s28, 0
      %p320 = por %p318, %p319
      %p321 = scmp.ne.s32.totalorder %s307, %s308
      %p322 = scmp.eq.s32.totalorder %s29, 1
      %p323 = por %p321, %p322
      %p325 = scmp.ne.s32.totalorder %s308, %s324
      %p326 = scmp.eq.s32.totalorder %s29, 0
      %p327 = por %p325, %p326
      %s328 = ssub.s32 %s23, %s30
      %p329 = scmp.eq.s32.totalorder %s328, 0
      %s331 = sadd.s32 %s330, 1
      %s332 = scalar_select %p329, %s330, %s331
      %p335 = pneg %p329
      %p336 = scmp.eq.s32.totalorder %s23, 1
      %p337 = por %p335, %p336
      %p338 = scmp.ne.s32.totalorder %s330, %s333
      %p339 = scmp.eq.s32.totalorder %s23, 0
      %p340 = por %p338, %p339
      %p341 = scmp.ne.s32.totalorder %s330, %s333
      %p342 = scmp.eq.s32.totalorder %s28, 1
      %p343 = por %p341, %p342
      %p344 = scmp.ne.s32.totalorder %s333, %s334
      %p345 = scmp.eq.s32.totalorder %s28, 0
      %p346 = por %p344, %p345
      %p347 = scmp.ne.s32.totalorder %s333, %s334
      %p348 = scmp.eq.s32.totalorder %s29, 1
      %p349 = por %p347, %p348
      %p351 = scmp.ne.s32.totalorder %s334, %s350
      %p352 = scmp.eq.s32.totalorder %s29, 0
      %p353 = por %p351, %p352
      %s354 = ssub.s32 %s23, %s30
      %p355 = scmp.eq.s32.totalorder %s354, 0
      %s357 = sadd.s32 %s356, 1
      %s358 = scalar_select %p355, %s356, %s357
      %p361 = pneg %p355
      %p362 = scmp.eq.s32.totalorder %s23, 1
      %p363 = por %p361, %p362
      %p364 = scmp.ne.s32.totalorder %s356, %s359
      %p365 = scmp.eq.s32.totalorder %s23, 0
      %p366 = por %p364, %p365
      %p367 = scmp.ne.s32.totalorder %s356, %s359
      %p368 = scmp.eq.s32.totalorder %s28, 1
      %p369 = por %p367, %p368
      %p370 = scmp.ne.s32.totalorder %s359, %s360
      %p371 = scmp.eq.s32.totalorder %s28, 0
      %p372 = por %p370, %p371
      %p373 = scmp.ne.s32.totalorder %s359, %s360
      %p374 = scmp.eq.s32.totalorder %s29, 1
      %p375 = por %p373, %p374
      %p377 = scmp.ne.s32.totalorder %s360, %s376
      %p378 = scmp.eq.s32.totalorder %s29, 0
      %p379 = por %p377, %p378
      %s380 = ssub.s32 %s23, %s30
      %p381 = scmp.eq.s32.totalorder %s380, 0
      %s383 = sadd.s32 %s382, 1
      %s384 = scalar_select %p381, %s382, %s383
      %p387 = pneg %p381
      %p388 = scmp.eq.s32.totalorder %s23, 1
      %p389 = por %p387, %p388
      %p390 = scmp.ne.s32.totalorder %s382, %s385
      %p391 = scmp.eq.s32.totalorder %s23, 0
      %p392 = por %p390, %p391
      %p393 = scmp.ne.s32.totalorder %s382, %s385
      %p394 = scmp.eq.s32.totalorder %s28, 1
      %p395 = por %p393, %p394
      %p396 = scmp.ne.s32.totalorder %s385, %s386
      %p397 = scmp.eq.s32.totalorder %s28, 0
      %p398 = por %p396, %p397
      %p399 = scmp.ne.s32.totalorder %s385, %s386
      %p400 = scmp.eq.s32.totalorder %s29, 1
      %p401 = por %p399, %p400
      %p403 = scmp.ne.s32.totalorder %s386, %s402
      %p404 = scmp.eq.s32.totalorder %s29, 0
      %p405 = por %p403, %p404
      %s407 = sadd.s32 %s406, 1
      %p410 = scmp.eq.s32.totalorder %s23, 1
      %p411 = scmp.ne.s32.totalorder %s406, %s408
      %p412 = scmp.eq.s32.totalorder %s23, 0
      %p413 = por %p411, %p412
      %p414 = scmp.ne.s32.totalorder %s406, %s408
      %p415 = scmp.eq.s32.totalorder %s28, 1
      %p416 = por %p414, %p415
      %p417 = scmp.ne.s32.totalorder %s408, %s409
      %p418 = scmp.eq.s32.totalorder %s28, 0
      %p419 = por %p417, %p418
      %p420 = scmp.ne.s32.totalorder %s408, %s409
      %p421 = scmp.eq.s32.totalorder %s29, 1
      %p422 = por %p420, %p421
      %p424 = scmp.ne.s32.totalorder %s409, %s423
      %p425 = scmp.eq.s32.totalorder %s29, 0
      %p426 = por %p424, %p425
      %p427 = scmp.le.s32.totalorder 1, %s23
      %p428 = scmp.lt.s32.totalorder %s23, 3
      %p429 = pnand %p427, %p428
      %p430 = pneg %p429
      // Predicated region
      $region9: #{tpu_custom_call.1} parent=5 // pred_check
        _
      $region10: #{tpu_custom_call.1} parent=5 // pred_check_branch
        %432 = sbr.rel (%p429) target = $region12
      $region11: #{tpu_custom_call.1} parent=5 // pred_region
        %s433 = ssub.s32 %s23, 1
        // Predicated region
        $region13: #{tpu_custom_call.1} parent=11 // pred_check
          %p434 = pneg %p44
        $region14: #{tpu_custom_call.1} parent=11 // pred_check_branch
          %436 = sbr.rel (%p434) target = $region16
        $region15: #{tpu_custom_call.1} parent=11 // pred_region
          _
        $region16: #{tpu_custom_call.1} parent=11 // pred_fallthru
          _
        // Predicated region
        $region17: #{tpu_custom_call.1} parent=11 // pred_check
          %p437 = pneg %p65
        $region18: #{tpu_custom_call.1} parent=11 // pred_check_branch
          %439 = sbr.rel (%p437) target = $region20
        $region19: #{tpu_custom_call.1} parent=11 // pred_region
          %s441 = ssub.s32 256, 256
          %442 = vsyncadd [#allocation4], %s441
          %s443 = sshll.u32 [#allocation3], 4
          %s444 = int_to_ptr.vmem [resolvable:$true] %s443
          %449 = dma.hbm_to_vmem [thread:$0]  %s1, 256, %s444, [#allocation4], 128, 128, 8
        $region20: #{tpu_custom_call.1} parent=11 // pred_fallthru
          _
        // Predicated region
        $region21: #{tpu_custom_call.1} parent=11 // pred_check
          %p450 = pneg %p86
        $region22: #{tpu_custom_call.1} parent=11 // pred_check_branch
          %452 = sbr.rel (%p450) target = $region24
        $region23: #{tpu_custom_call.1} parent=11 // pred_region
          _
        $region24: #{tpu_custom_call.1} parent=11 // pred_fallthru
          _
      $region12: #{tpu_custom_call.1} parent=5 // pred_fallthru
        _
      %p453 = scmp.lt.s32.totalorder %s23, 2
      // Predicated region
      $region25: #{tpu_custom_call.1} parent=5 // pred_check
        %p454 = pneg %p453
      $region26: #{tpu_custom_call.1} parent=5 // pred_check_branch
        %456 = sbr.rel (%p454) target = $region28
      $region27: #{tpu_custom_call.1} parent=5 // pred_region
        // Predicated region
        $region29: #{tpu_custom_call.1} parent=27 // pred_check
          %p457 = pneg %p106
        $region30: #{tpu_custom_call.1} parent=27 // pred_check_branch
          %459 = sbr.rel (%p457) target = $region32
        $region31: #{tpu_custom_call.1} parent=27 // pred_region
          %p460 = scmp.lt.s32.totalorder %s23, 1
          %s461 = scalar_select %p460, %s23, 1
          %s462 = smul.addr %s461, 4
          %s463 = smul.addr %s462, 4
          %s464 = scalar_lea.vmem %s3, %s463
        $region32: #{tpu_custom_call.1} parent=27 // pred_fallthru
          _
        // Predicated region
        $region33: #{tpu_custom_call.1} parent=27 // pred_check
          %p465 = pneg %p132
        $region34: #{tpu_custom_call.1} parent=27 // pred_check_branch
          %467 = sbr.rel (%p465) target = $region36
        $region35: #{tpu_custom_call.1} parent=27 // pred_region
          %p468 = scmp.lt.s32.totalorder %s23, 1
          %s469 = scalar_select %p468, %s23, 1
          %s470 = scalar_lea.vmem %s4, %s469
        $region36: #{tpu_custom_call.1} parent=27 // pred_fallthru
          _
        // Predicated region
        $region37: #{tpu_custom_call.1} parent=27 // pred_check
          %p471 = pneg %p158
        $region38: #{tpu_custom_call.1} parent=27 // pred_check_branch
          %473 = sbr.rel (%p471) target = $region40
        $region39: #{tpu_custom_call.1} parent=27 // pred_region
          %p474 = scmp.lt.s32.totalorder %s23, 1
          %s475 = scalar_select %p474, %s23, 1
          %s476 = smul.addr %s475, 4
          %s477 = smul.addr %s476, 4
          %s478 = scalar_lea.vmem %s5, %s477
        $region40: #{tpu_custom_call.1} parent=27 // pred_fallthru
          _
        // Predicated region
        $region41: #{tpu_custom_call.1} parent=27 // pred_check
          %p479 = pneg %p184
        $region42: #{tpu_custom_call.1} parent=27 // pred_check_branch
          %481 = sbr.rel (%p479) target = $region44
        $region43: #{tpu_custom_call.1} parent=27 // pred_region
          %p482 = scmp.lt.s32.totalorder %s23, 1
          %s483 = scalar_select %p482, %s23, 1
          %s484 = scalar_lea.vmem %s6, %s483
        $region44: #{tpu_custom_call.1} parent=27 // pred_fallthru
          _
        // Predicated region
        $region45: #{tpu_custom_call.1} parent=27 // pred_check
          %p485 = pneg %p210
        $region46: #{tpu_custom_call.1} parent=27 // pred_check_branch
          %487 = sbr.rel (%p485) target = $region48
        $region47: #{tpu_custom_call.1} parent=27 // pred_region
          %p488 = scmp.lt.s32.totalorder %s23, 1
          %s489 = scalar_select %p488, %s23, 1
          %s490 = scalar_lea.vmem %s7, %s489
        $region48: #{tpu_custom_call.1} parent=27 // pred_fallthru
          _
        // Predicated region
        $region49: #{tpu_custom_call.1} parent=27 // pred_check
          %p491 = pneg %p236
        $region50: #{tpu_custom_call.1} parent=27 // pred_check_branch
          %493 = sbr.rel (%p491) target = $region52
        $region51: #{tpu_custom_call.1} parent=27 // pred_region
          %p494 = scmp.lt.s32.totalorder %s23, 1
          %s495 = scalar_select %p494, %s23, 1
          %s496 = scalar_lea.vmem %s8, %s495
        $region52: #{tpu_custom_call.1} parent=27 // pred_fallthru
          _
        // Predicated region
        $region53: #{tpu_custom_call.1} parent=27 // pred_check
          %p497 = pneg %p262
        $region54: #{tpu_custom_call.1} parent=27 // pred_check_branch
          %499 = sbr.rel (%p497) target = $region56
        $region55: #{tpu_custom_call.1} parent=27 // pred_region
          %p500 = scmp.lt.s32.totalorder %s23, 1
          %s501 = scalar_select %p500, %s23, 1
          %s502 = smul.addr %s501, 4
          %s503 = smul.addr %s502, 4
          %s504 = scalar_lea.vmem %s9, %s503
        $region56: #{tpu_custom_call.1} parent=27 // pred_fallthru
          _
        // Predicated region
        $region57: #{tpu_custom_call.1} parent=27 // pred_check
          %p505 = pneg %p288
        $region58: #{tpu_custom_call.1} parent=27 // pred_check_branch
          %507 = sbr.rel (%p505) target = $region60
        $region59: #{tpu_custom_call.1} parent=27 // pred_region
          %p508 = scmp.lt.s32.totalorder %s23, 1
          %s509 = scalar_select %p508, %s23, 1
          %s510 = scalar_lea.vmem %s10, %s509
        $region60: #{tpu_custom_call.1} parent=27 // pred_fallthru
          _
        // Predicated region
        $region61: #{tpu_custom_call.1} parent=27 // pred_check
          %p511 = pneg %p314
        $region62: #{tpu_custom_call.1} parent=27 // pred_check_branch
          %513 = sbr.rel (%p511) target = $region64
        $region63: #{tpu_custom_call.1} parent=27 // pred_region
          %p514 = scmp.lt.s32.totalorder %s23, 1
          %s515 = scalar_select %p514, %s23, 1
          %s516 = smul.addr %s515, 8
          %s517 = smul.addr %s516, 4
          %s518 = scalar_lea.vmem %s11, %s517
        $region64: #{tpu_custom_call.1} parent=27 // pred_fallthru
          _
        // Predicated region
        $region65: #{tpu_custom_call.1} parent=27 // pred_check
          %p519 = pneg %p340
        $region66: #{tpu_custom_call.1} parent=27 // pred_check_branch
          %521 = sbr.rel (%p519) target = $region68
        $region67: #{tpu_custom_call.1} parent=27 // pred_region
          %p522 = scmp.lt.s32.totalorder %s23, 1
          %s523 = scalar_select %p522, %s23, 1
          %s524 = scalar_lea.vmem %s12, %s523
        $region68: #{tpu_custom_call.1} parent=27 // pred_fallthru
          _
        // Predicated region
        $region69: #{tpu_custom_call.1} parent=27 // pred_check
          %p525 = pneg %p366
        $region70: #{tpu_custom_call.1} parent=27 // pred_check_branch
          %527 = sbr.rel (%p525) target = $region72
        $region71: #{tpu_custom_call.1} parent=27 // pred_region
          %p528 = scmp.lt.s32.totalorder %s23, 1
          %s529 = scalar_select %p528, %s23, 1
          %s530 = scalar_lea.vmem %s13, %s529
        $region72: #{tpu_custom_call.1} parent=27 // pred_fallthru
          _
        // Predicated region
        $region73: #{tpu_custom_call.1} parent=27 // pred_check
          %p531 = pneg %p392
        $region74: #{tpu_custom_call.1} parent=27 // pred_check_branch
          %533 = sbr.rel (%p531) target = $region76
        $region75: #{tpu_custom_call.1} parent=27 // pred_region
          %p534 = scmp.lt.s32.totalorder %s23, 1
          %s535 = scalar_select %p534, %s23, 1
          %s536 = scalar_lea.vmem %s14, %s535
        $region76: #{tpu_custom_call.1} parent=27 // pred_fallthru
          _
      $region28: #{tpu_custom_call.1} parent=5 // pred_fallthru
        _
      %p537 = scmp.le.s32.totalorder 1, %s23
      %p538 = scmp.lt.s32.totalorder %s23, 3
      %p539 = pnand %p537, %p538
      %p540 = pneg %p539
      // Predicated region
      $region77: #{tpu_custom_call.1} parent=5 // pred_check
        _
      $region78: #{tpu_custom_call.1} parent=5 // pred_check_branch
        %542 = sbr.rel (%p539) target = $region80
      $region79: #{tpu_custom_call.1} parent=5 // pred_region
        %s543 = ssub.s32 %s23, 1
        // Predicated region
        $region81: #{tpu_custom_call.1} parent=79 // pred_check
          %p544 = pneg %p65
        $region82: #{tpu_custom_call.1} parent=79 // pred_check_branch
          %546 = sbr.rel (%p544) target = $region84
        $region83: #{tpu_custom_call.1} parent=79 // pred_region
          %547 = dma.done [#allocation4], 256
        $region84: #{tpu_custom_call.1} parent=79 // pred_fallthru
          _
        %p548 = pneg %p44
        %p549 = pneg %p41
        %p550 = pneg %p65
        %p551 = pneg %p62
        %p552 = pneg %p86
        %p553 = pneg %p83
        %p554 = scmp.lt.s32.totalorder %s28, 1
        %s555 = scalar_select %p554, %s28, 1
        %s556 = smul.addr %s555, 4
        %s557 = smul.addr %s556, 4
        %s558 = scalar_lea.vmem %s3, %s557
        %p559 = pneg %p112
        %p560 = pneg %p109
        %p561 = scmp.lt.s32.totalorder %s28, 1
        %s562 = scalar_select %p561, %s28, 1
        %s563 = scalar_lea.vmem %s4, %s562
        %p564 = pneg %p138
        %p565 = pneg %p135
        %p566 = scmp.lt.s32.totalorder %s28, 1
        %s567 = scalar_select %p566, %s28, 1
        %s568 = smul.addr %s567, 4
        %s569 = smul.addr %s568, 4
        %s570 = scalar_lea.vmem %s5, %s569
        %p571 = pneg %p164
        %p572 = pneg %p161
        %p573 = scmp.lt.s32.totalorder %s28, 1
        %s574 = scalar_select %p573, %s28, 1
        %s575 = scalar_lea.vmem %s6, %s574
        %p576 = pneg %p190
        %p577 = pneg %p187
        %p578 = scmp.lt.s32.totalorder %s28, 1
        %s579 = scalar_select %p578, %s28, 1
        %s580 = scalar_lea.vmem %s7, %s579
        %p581 = pneg %p216
        %p582 = pneg %p213
        %p583 = scmp.lt.s32.totalorder %s28, 1
        %s584 = scalar_select %p583, %s28, 1
        %s585 = scalar_lea.vmem %s8, %s584
        %p586 = pneg %p242
        %p587 = pneg %p239
        %p588 = scmp.lt.s32.totalorder %s28, 1
        %s589 = scalar_select %p588, %s28, 1
        %s590 = smul.addr %s589, 4
        %s591 = smul.addr %s590, 4
        %s592 = scalar_lea.vmem %s9, %s591
        %p593 = pneg %p268
        %p594 = pneg %p265
        %p595 = scmp.lt.s32.totalorder %s28, 1
        %s596 = scalar_select %p595, %s28, 1
        %s597 = scalar_lea.vmem %s10, %s596
        %p598 = pneg %p294
        %p599 = pneg %p291
        %p600 = scmp.lt.s32.totalorder %s28, 1
        %s601 = scalar_select %p600, %s28, 1
        %s602 = smul.addr %s601, 8
        %s603 = smul.addr %s602, 4
        %s604 = scalar_lea.vmem %s11, %s603
        %p605 = pneg %p320
        %p606 = pneg %p317
        %p607 = scmp.lt.s32.totalorder %s28, 1
        %s608 = scalar_select %p607, %s28, 1
        %s609 = scalar_lea.vmem %s12, %s608
        %p610 = pneg %p346
        %p611 = pneg %p343
        %p612 = scmp.lt.s32.totalorder %s28, 1
        %s613 = scalar_select %p612, %s28, 1
        %s614 = scalar_lea.vmem %s13, %s613
        %p615 = pneg %p372
        %p616 = pneg %p369
        %p617 = scmp.lt.s32.totalorder %s28, 1
        %s618 = scalar_select %p617, %s28, 1
        %s619 = scalar_lea.vmem %s14, %s618
        %p620 = pneg %p398
        %p621 = pneg %p395
        %p622 = pneg %p419
        %p623 = pneg %p416
        %p624 = scmp.lt.s32.totalorder %s28, 1
        %s625 = scalar_select %p624, %s28, 1
        %s626 = smul.addr %s625, 4
        %s627 = smul.addr %s626, 4
        %s628 = scalar_lea.vmem %s3, %s627
        %p629 = scmp.lt.s32.totalorder %s28, 1
        %s630 = scalar_select %p629, %s28, 1
        %s631 = scalar_lea.vmem %s4, %s630
        %p632 = scmp.lt.s32.totalorder %s28, 1
        %s633 = scalar_select %p632, %s28, 1
        %s634 = smul.addr %s633, 4
        %s635 = smul.addr %s634, 4
        %s636 = scalar_lea.vmem %s5, %s635
        %p637 = scmp.lt.s32.totalorder %s28, 1
        %s638 = scalar_select %p637, %s28, 1
        %s639 = scalar_lea.vmem %s6, %s638
        %p640 = scmp.lt.s32.totalorder %s28, 1
        %s641 = scalar_select %p640, %s28, 1
        %s642 = scalar_lea.vmem %s7, %s641
        %p643 = scmp.lt.s32.totalorder %s28, 1
        %s644 = scalar_select %p643, %s28, 1
        %s645 = scalar_lea.vmem %s8, %s644
        %p646 = scmp.lt.s32.totalorder %s28, 1
        %s647 = scalar_select %p646, %s28, 1
        %s648 = smul.addr %s647, 4
        %s649 = smul.addr %s648, 4
        %s650 = scalar_lea.vmem %s9, %s649
        %p651 = scmp.lt.s32.totalorder %s28, 1
        %s652 = scalar_select %p651, %s28, 1
        %s653 = scalar_lea.vmem %s10, %s652
        %p654 = scmp.lt.s32.totalorder %s28, 1
        %s655 = scalar_select %p654, %s28, 1
        %s656 = smul.addr %s655, 8
        %s657 = smul.addr %s656, 4
        %s658 = scalar_lea.vmem %s11, %s657
        %p659 = scmp.lt.s32.totalorder %s28, 1
        %s660 = scalar_select %p659, %s28, 1
        %s661 = scalar_lea.vmem %s12, %s660
        %p662 = scmp.lt.s32.totalorder %s28, 1
        %s663 = scalar_select %p662, %s28, 1
        %s664 = scalar_lea.vmem %s13, %s663
        %p665 = scmp.lt.s32.totalorder %s28, 1
        %s666 = scalar_select %p665, %s28, 1
        %s667 = scalar_lea.vmem %s14, %s666
        %p669 = scmp.eq.s32.totalorder %s28, 0
        // Predicated region
        $region85: #{tpu_custom_call.1} parent=79 // pred_check
          %p670 = pneg %p669
        $region86: #{tpu_custom_call.1} parent=79 // pred_check_branch
          %672 = sbr.rel (%p670) target = $region88
        $region87: #{tpu_custom_call.1} parent=79 // pred_region
          %v673 = vld [vmem:[%s0] sm:$0xff]
          %v674 = vld [vmem:[%s0 + $0x8] sm:$0xff]
          %vm675 = vcmask 261120
          %676 = vst.msk [vmem:[#allocation2] sm:$0xff] %vm675, %v673
          %677 = vst.msk [vmem:[#allocation2 + $0x8] sm:$0xff] %vm675, %v674
        $region88: #{tpu_custom_call.1} parent=79 // pred_fallthru
          _
        %v678 = vld [vmem:[#allocation2] sm:$0xff]
        %v679 = vld [vmem:[#allocation2 + $0x8] sm:$0xff]
        %v680 = vpack.c.bf16 %v679, %v678
        %v681 = vld [vmem:[#allocation3] sm:$0xff]
        %v682 = vld [vmem:[#allocation3 + $0x8] sm:$0xff]
        %v683 = vld [vmem:[%s628] sm:$0xf]
        %v684 = vld [vmem:[%s628 + $0x4] sm:$0xf]
        %v685 = vld [vmem:[%s628 + $0x8] sm:$0xf]
        %v686 = vld [vmem:[%s628 + $0xc] sm:$0xf]
        %v687 = vld [vmem:[%s631] sm:$0x1]
        %v689 = vlaneseq
        %v690 = vshrl.u32 %v689, 7
        %v691 = vsub.s32 0, %v690
        %v692 = vrot.slane %v687, %v691
        %v698 = vunpack.c.l.b16 %v683
        %v699 = vunpack.c.l.b16 %v684
        %v700 = vunpack.c.l.b16 %v685
        %v701 = vunpack.c.l.b16 %v686
        %v702 = vpack.c.b16 %v699, %v698
        %v703 = vpack.c.b16 %v701, %v700
        %vm706 = vcmask 261120
        %v708 = vsel %vm706, %v680, 0
        %710 = vmatprep.subr.bf16.mxu0 0
        %711 = vmatpush1.bf16.msra.mxu0 %v702
        %712 = vmatprep.subr.bf16.mxu0 0
        %713 = vmatpush1.bf16.msra.mxu0 %v703
        %714 = vmatprep.subr.bf16.mxu0 0
        %715 = vmatpush1.bf16.msra.mxu0 0
        %716 = vmatprep.subr.bf16.mxu0 0
        %717 = vmatpush1.bf16.msra.mxu0 0
        %718 = vmatprep.subr.bf16.mxu0 0
        %719 = vmatpush1.bf16.msra.mxu0 0
        %720 = vmatprep.subr.bf16.mxu0 0
        %721 = vmatpush1.bf16.msra.mxu0 0
        %722 = vmatprep.subr.bf16.mxu0 0
        %723 = vmatpush1.bf16.msra.mxu0 0
        %724 = vmatprep.subr.bf16.mxu0 0
        %725 = vmatpush1.bf16.msra.mxu0 0
        %726 = vmatprep.subr.bf16.mxu0 0
        %727 = vmatpush1.bf16.msra.mxu0 0
        %728 = vmatprep.subr.bf16.mxu0 0
        %729 = vmatpush1.bf16.msra.mxu0 0
        %730 = vmatprep.subr.bf16.mxu0 0
        %731 = vmatpush1.bf16.msra.mxu0 0
        %732 = vmatprep.subr.bf16.mxu0 0
        %733 = vmatpush1.bf16.msra.mxu0 0
        %734 = vmatprep.subr.bf16.mxu0 0
        %735 = vmatpush1.bf16.msra.mxu0 0
        %736 = vmatprep.subr.bf16.mxu0 0
        %737 = vmatpush1.bf16.msra.mxu0 0
        %738 = vmatprep.subr.bf16.mxu0 0
        %739 = vmatpush1.bf16.msra.mxu0 0
        %740 = vmatprep.subr.bf16.mxu0 0
        %741 = vmatpush1.bf16.msra.mxu0 0
        %742 = vmatprep.mubr.bf16.mxu0 0
        %743 = vmatmul.mubr.bf16.gmra.mrb[0].mxu0 %v708
        %v744 = vpop.f32.mrb[0].mxu0
        %v745 = vadd.f32 %v692, %v744
        %v746 = vpop.f32.mrb[0].mxu0
        %v747 = vpop.f32.mrb[0].mxu0
        %v748 = vadd.f32 %v692, %v747
        %v749 = vpop.f32.mrb[0].mxu0
        %750 = vdwg.mxu0
        %v751 = vpack.c.bf16 %v748, %v745
        %753 = vrot.lane.b32.xlu0 %v751, 96
        %v754 = vpop.permute.xlu0 %753
        %vm755 = vcmask 130048
        %v757 = vsel %vm755, %v751, 0
        %v760 = vsel %vm755, %v754, 0
        %762 = vmatprep.subr.bf16.mxu0 0
        %763 = vmatpush1.bf16.xpose.msra.mxu0 %v760
        %764 = vmatprep.subr.bf16.mxu0 0
        %765 = vmatpush1.bf16.xpose.msra.mxu0 0
        %766 = vmatprep.subr.bf16.mxu0 0
        %767 = vmatpush1.bf16.xpose.msra.mxu0 0
        %768 = vmatprep.subr.bf16.mxu0 0
        %769 = vmatpush1.bf16.xpose.msra.mxu0 0
        %770 = vmatprep.subr.bf16.mxu0 0
        %771 = vmatpush1.bf16.xpose.msra.mxu0 0
        %772 = vmatprep.subr.bf16.mxu0 0
        %773 = vmatpush1.bf16.xpose.msra.mxu0 0
        %774 = vmatprep.subr.bf16.mxu0 0
        %775 = vmatpush1.bf16.xpose.msra.mxu0 0
        %776 = vmatprep.subr.bf16.mxu0 0
        %777 = vmatpush1.bf16.xpose.msra.mxu0 0
        %778 = vmatprep.subr.bf16.mxu0 0
        %779 = vmatpush1.bf16.xpose.msra.mxu0 0
        %780 = vmatprep.subr.bf16.mxu0 0
        %781 = vmatpush1.bf16.xpose.msra.mxu0 0
        %782 = vmatprep.subr.bf16.mxu0 0
        %783 = vmatpush1.bf16.xpose.msra.mxu0 0
        %784 = vmatprep.subr.bf16.mxu0 0
        %785 = vmatpush1.bf16.xpose.msra.mxu0 0
        %786 = vmatprep.subr.bf16.mxu0 0
        %787 = vmatpush1.bf16.xpose.msra.mxu0 0
        %788 = vmatprep.subr.bf16.mxu0 0
        %789 = vmatpush1.bf16.xpose.msra.mxu0 0
        %790 = vmatprep.subr.bf16.mxu0 0
        %791 = vmatpush1.bf16.xpose.msra.mxu0 0
        %792 = vmatprep.subr.bf16.mxu0 0
        %793 = vmatpush1.bf16.xpose.msra.mxu0 0
        %794 = vmatprep.mubr.bf16.mxu0 0
        %795 = vmatmul.mubr.bf16.gmra.mrb[0].mxu0 %v757
        %v796 = vpop.f32.mrb[0].mxu0
        %v797 = vadd.f32 0.0, %v796
        %v798 = vpop.f32.mrb[0].mxu0
        %v799 = vpop.f32.mrb[0].mxu0
        %v800 = vadd.f32 0.0, %v799
        %v801 = vpop.f32.mrb[0].mxu0
        %802 = vdwg.mxu0
        %v803 = vmul.f32 %v797, 0.25
        %v804 = vmul.f32 %v800, 0.25
        %v805 = vadd.f32 %v803, %v681
        %v806 = vadd.f32 %v804, %v682
        %v807 = vsel %vm755, %v805, -inf
        %808 = vmax.xlane.f32.xlu0 %v807
        %v809 = vpop.xlane.xlu0 %808
        %v810 = vsel %vm755, %v806, -inf
        %811 = vmax.xlane.f32.xlu0 %v810
        %v812 = vpop.xlane.xlu0 %811
        %v813 = vsub.f32 %v805, %v809
        %v814 = vsub.f32 %v806, %v812
        %v815 = vmul.f32 %v813, 1.442695
        %v816 = vpow.pop %v815
        %v817 = vmul.f32 %v814, 1.442695
        %v818 = vpow.pop %v817
        %v819 = vsel %vm755, %v816, 0.0
        %820 = vadd.xlane.f32.xlu0 %v819
        %v821 = vpop.xlane.xlu0 %820
        %v822 = vsel %vm755, %v818, 0.0
        %823 = vadd.xlane.f32.xlu0 %v822
        %v824 = vpop.xlane.xlu0 %823
        %v825 = vrcp.pop %v821
        %v826 = vrcp.pop %v824
        %v827 = vmul.f32 %v816, %v825
        %v828 = vmul.f32 %v818, %v826
        %v829 = vpack.c.bf16 %v828, %v827
        %830 = vrot.lane.b32.xlu0 %v751, 64
        %v831 = vpop.permute.xlu0 %830
        %v834 = vsel %vm755, %v829, 0
        %836 = vmatprep.subr.bf16.mxu0 0
        %837 = vmatpush1.bf16.msra.mxu0 %v831
        %838 = vmatprep.subr.bf16.mxu0 0
        %839 = vmatpush1.bf16.msra.mxu0 0
        %840 = vmatprep.subr.bf16.mxu0 0
        %841 = vmatpush1.bf16.msra.mxu0 0
        %842 = vmatprep.subr.bf16.mxu0 0
        %843 = vmatpush1.bf16.msra.mxu0 0
        %844 = vmatprep.subr.bf16.mxu0 0
        %845 = vmatpush1.bf16.msra.mxu0 0
        %846 = vmatprep.subr.bf16.mxu0 0
        %847 = vmatpush1.bf16.msra.mxu0 0
        %848 = vmatprep.subr.bf16.mxu0 0
        %849 = vmatpush1.bf16.msra.mxu0 0
        %850 = vmatprep.subr.bf16.mxu0 0
        %851 = vmatpush1.bf16.msra.mxu0 0
        %852 = vmatprep.subr.bf16.mxu0 0
        %853 = vmatpush1.bf16.msra.mxu0 0
        %854 = vmatprep.subr.bf16.mxu0 0
        %855 = vmatpush1.bf16.msra.mxu0 0
        %856 = vmatprep.subr.bf16.mxu0 0
        %857 = vmatpush1.bf16.msra.mxu0 0
        %858 = vmatprep.subr.bf16.mxu0 0
        %859 = vmatpush1.bf16.msra.mxu0 0
        %860 = vmatprep.subr.bf16.mxu0 0
        %861 = vmatpush1.bf16.msra.mxu0 0
        %862 = vmatprep.subr.bf16.mxu0 0
        %863 = vmatpush1.bf16.msra.mxu0 0
        %864 = vmatprep.subr.bf16.mxu0 0
        %865 = vmatpush1.bf16.msra.mxu0 0
        %866 = vmatprep.subr.bf16.mxu0 0
        %867 = vmatpush1.bf16.msra.mxu0 0
        %868 = vmatprep.mubr.bf16.mxu0 0
        %869 = vmatmul.mubr.bf16.gmra.mrb[0].mxu0 %v834
        %v870 = vpop.f32.mrb[0].mxu0
        %v871 = vadd.f32 0.0, %v870
        %v872 = vpop.f32.mrb[0].mxu0
        %v873 = vpop.f32.mrb[0].mxu0
        %v874 = vadd.f32 0.0, %v873
        %v875 = vpop.f32.mrb[0].mxu0
        %876 = vdwg.mxu0
        %877 = vrot.lane.b32.xlu0 %v751, 112
        %v878 = vpop.permute.xlu0 %877
        %879 = vrot.lane.b32.xlu0 %v751, 80
        %v880 = vpop.permute.xlu0 %879
        %v882 = vsel %vm755, %v878, 0
        %v885 = vsel %vm755, %v880, 0
        %887 = vmatprep.subr.bf16.mxu0 0
        %888 = vmatpush1.bf16.xpose.msra.mxu0 %v885
        %889 = vmatprep.subr.bf16.mxu0 0
        %890 = vmatpush1.bf16.xpose.msra.mxu0 0
        %891 = vmatprep.subr.bf16.mxu0 0
        %892 = vmatpush1.bf16.xpose.msra.mxu0 0
        %893 = vmatprep.subr.bf16.mxu0 0
        %894 = vmatpush1.bf16.xpose.msra.mxu0 0
        %895 = vmatprep.subr.bf16.mxu0 0
        %896 = vmatpush1.bf16.xpose.msra.mxu0 0
        %897 = vmatprep.subr.bf16.mxu0 0
        %898 = vmatpush1.bf16.xpose.msra.mxu0 0
        %899 = vmatprep.subr.bf16.mxu0 0
        %900 = vmatpush1.bf16.xpose.msra.mxu0 0
        %901 = vmatprep.subr.bf16.mxu0 0
        %902 = vmatpush1.bf16.xpose.msra.mxu0 0
        %903 = vmatprep.subr.bf16.mxu0 0
        %904 = vmatpush1.bf16.xpose.msra.mxu0 0
        %905 = vmatprep.subr.bf16.mxu0 0
        %906 = vmatpush1.bf16.xpose.msra.mxu0 0
        %907 = vmatprep.subr.bf16.mxu0 0
        %908 = vmatpush1.bf16.xpose.msra.mxu0 0
        %909 = vmatprep.subr.bf16.mxu0 0
        %910 = vmatpush1.bf16.xpose.msra.mxu0 0
        %911 = vmatprep.subr.bf16.mxu0 0
        %912 = vmatpush1.bf16.xpose.msra.mxu0 0
        %913 = vmatprep.subr.bf16.mxu0 0
        %914 = vmatpush1.bf16.xpose.msra.mxu0 0
        %915 = vmatprep.subr.bf16.mxu0 0
        %916 = vmatpush1.bf16.xpose.msra.mxu0 0
        %917 = vmatprep.subr.bf16.mxu0 0
        %918 = vmatpush1.bf16.xpose.msra.mxu0 0
        %919 = vmatprep.mubr.bf16.mxu0 0
        %920 = vmatmul.mubr.bf16.gmra.mrb[0].mxu0 %v882
        %v921 = vpop.f32.mrb[0].mxu0
        %v922 = vadd.f32 0.0, %v921
        %v923 = vpop.f32.mrb[0].mxu0
        %v924 = vpop.f32.mrb[0].mxu0
        %v925 = vadd.f32 0.0, %v924
        %v926 = vpop.f32.mrb[0].mxu0
        %927 = vdwg.mxu0
        %v928 = vmul.f32 %v922, 0.25
        %v929 = vmul.f32 %v925, 0.25
        %v930 = vadd.f32 %v928, %v681
        %v931 = vadd.f32 %v929, %v682
        %v932 = vsel %vm755, %v930, -inf
        %933 = vmax.xlane.f32.xlu0 %v932
        %v934 = vpop.xlane.xlu0 %933
        %v935 = vsel %vm755, %v931, -inf
        %936 = vmax.xlane.f32.xlu0 %v935
        %v937 = vpop.xlane.xlu0 %936
        %v938 = vsub.f32 %v930, %v934
        %v939 = vsub.f32 %v931, %v937
        %v940 = vmul.f32 %v938, 1.442695
        %v941 = vpow.pop %v940
        %v942 = vmul.f32 %v939, 1.442695
        %v943 = vpow.pop %v942
        %v944 = vsel %vm755, %v941, 0.0
        %945 = vadd.xlane.f32.xlu0 %v944
        %v946 = vpop.xlane.xlu0 %945
        %v947 = vsel %vm755, %v943, 0.0
        %948 = vadd.xlane.f32.xlu0 %v947
        %v949 = vpop.xlane.xlu0 %948
        %v950 = vrcp.pop %v946
        %v951 = vrcp.pop %v949
        %v952 = vmul.f32 %v941, %v950
        %v953 = vmul.f32 %v943, %v951
        %v954 = vpack.c.bf16 %v953, %v952
        %955 = vrot.lane.b32.xlu0 %v751, 48
        %v956 = vpop.permute.xlu0 %955
        %v959 = vsel %vm755, %v954, 0
        %961 = vmatprep.subr.bf16.mxu0 0
        %962 = vmatpush1.bf16.msra.mxu0 %v956
        %963 = vmatprep.subr.bf16.mxu0 0
        %964 = vmatpush1.bf16.msra.mxu0 0
        %965 = vmatprep.subr.bf16.mxu0 0
        %966 = vmatpush1.bf16.msra.mxu0 0
        %967 = vmatprep.subr.bf16.mxu0 0
        %968 = vmatpush1.bf16.msra.mxu0 0
        %969 = vmatprep.subr.bf16.mxu0 0
        %970 = vmatpush1.bf16.msra.mxu0 0
        %971 = vmatprep.subr.bf16.mxu0 0
        %972 = vmatpush1.bf16.msra.mxu0 0
        %973 = vmatprep.subr.bf16.mxu0 0
        %974 = vmatpush1.bf16.msra.mxu0 0
        %975 = vmatprep.subr.bf16.mxu0 0
        %976 = vmatpush1.bf16.msra.mxu0 0
        %977 = vmatprep.subr.bf16.mxu0 0
        %978 = vmatpush1.bf16.msra.mxu0 0
        %979 = vmatprep.subr.bf16.mxu0 0
        %980 = vmatpush1.bf16.msra.mxu0 0
        %981 = vmatprep.subr.bf16.mxu0 0
        %982 = vmatpush1.bf16.msra.mxu0 0
        %983 = vmatprep.subr.bf16.mxu0 0
        %984 = vmatpush1.bf16.msra.mxu0 0
        %985 = vmatprep.subr.bf16.mxu0 0
        %986 = vmatpush1.bf16.msra.mxu0 0
        %987 = vmatprep.subr.bf16.mxu0 0
        %988 = vmatpush1.bf16.msra.mxu0 0
        %989 = vmatprep.subr.bf16.mxu0 0
        %990 = vmatpush1.bf16.msra.mxu0 0
        %991 = vmatprep.subr.bf16.mxu0 0
        %992 = vmatpush1.bf16.msra.mxu0 0
        %993 = vmatprep.mubr.bf16.mxu0 0
        %994 = vmatmul.mubr.bf16.gmra.mrb[0].mxu0 %v959
        %v995 = vpop.f32.mrb[0].mxu0
        %v996 = vadd.f32 0.0, %v995
        %v997 = vpop.f32.mrb[0].mxu0
        %v998 = vpop.f32.mrb[0].mxu0
        %v999 = vadd.f32 0.0, %v998
        %v1000 = vpop.f32.mrb[0].mxu0
        %1001 = vdwg.mxu0
        %1004 = vrot.lane.b32.xlu0 %v996, 16
        %v1005 = vpop.permute.xlu0 %1004
        %1006 = vrot.lane.b32.xlu0 %v999, 16
        %v1007 = vpop.permute.xlu0 %1006
        %v1010 = vsel %vm755, %v871, %v1005
        %v1011 = vsel %vm755, %v874, %v1007
        %v1012 = vpack.c.bf16 %v1011, %v1010
        %v1013 = vld [vmem:[%s636] sm:$0xf]
        %v1014 = vld [vmem:[%s636 + $0x4] sm:$0xf]
        %v1015 = vld [vmem:[%s636 + $0x8] sm:$0xf]
        %v1016 = vld [vmem:[%s636 + $0xc] sm:$0xf]
        %v1017 = vld [vmem:[%s639] sm:$0x1]
        %v1019 = vlaneseq
        %v1020 = vshrl.u32 %v1019, 7
        %v1021 = vsub.s32 0, %v1020
        %v1022 = vrot.slane %v1017, %v1021
        %v1028 = vunpack.c.l.b16 %v1013
        %v1029 = vunpack.c.l.b16 %v1014
        %v1030 = vunpack.c.l.b16 %v1015
        %v1031 = vunpack.c.l.b16 %v1016
        %v1032 = vpack.c.b16 %v1029, %v1028
        %v1033 = vpack.c.b16 %v1031, %v1030
        %v1037 = vsel %vm706, %v1012, 0
        %1039 = vmatprep.subr.bf16.mxu0 0
        %1040 = vmatpush1.bf16.msra.mxu0 %v1032
        %1041 = vmatprep.subr.bf16.mxu0 0
        %1042 = vmatpush1.bf16.msra.mxu0 %v1033
        %1043 = vmatprep.subr.bf16.mxu0 0
        %1044 = vmatpush1.bf16.msra.mxu0 0
        %1045 = vmatprep.subr.bf16.mxu0 0
        %1046 = vmatpush1.bf16.msra.mxu0 0
        %1047 = vmatprep.subr.bf16.mxu0 0
        %1048 = vmatpush1.bf16.msra.mxu0 0
        %1049 = vmatprep.subr.bf16.mxu0 0
        %1050 = vmatpush1.bf16.msra.mxu0 0
        %1051 = vmatprep.subr.bf16.mxu0 0
        %1052 = vmatpush1.bf16.msra.mxu0 0
        %1053 = vmatprep.subr.bf16.mxu0 0
        %1054 = vmatpush1.bf16.msra.mxu0 0
        %1055 = vmatprep.subr.bf16.mxu0 0
        %1056 = vmatpush1.bf16.msra.mxu0 0
        %1057 = vmatprep.subr.bf16.mxu0 0
        %1058 = vmatpush1.bf16.msra.mxu0 0
        %1059 = vmatprep.subr.bf16.mxu0 0
        %1060 = vmatpush1.bf16.msra.mxu0 0
        %1061 = vmatprep.subr.bf16.mxu0 0
        %1062 = vmatpush1.bf16.msra.mxu0 0
        %1063 = vmatprep.subr.bf16.mxu0 0
        %1064 = vmatpush1.bf16.msra.mxu0 0
        %1065 = vmatprep.subr.bf16.mxu0 0
        %1066 = vmatpush1.bf16.msra.mxu0 0
        %1067 = vmatprep.subr.bf16.mxu0 0
        %1068 = vmatpush1.bf16.msra.mxu0 0
        %1069 = vmatprep.subr.bf16.mxu0 0
        %1070 = vmatpush1.bf16.msra.mxu0 0
        %1071 = vmatprep.mubr.bf16.mxu0 0
        %1072 = vmatmul.mubr.bf16.gmra.mrb[0].mxu0 %v1037
        %v1073 = vpop.f32.mrb[0].mxu0
        %v1074 = vadd.f32 %v1022, %v1073
        %v1075 = vpop.f32.mrb[0].mxu0
        %v1076 = vpop.f32.mrb[0].mxu0
        %v1077 = vadd.f32 %v1022, %v1076
        %v1078 = vpop.f32.mrb[0].mxu0
        %1079 = vdwg.mxu0
        %v1080 = vadd.f32 %v678, %v1074
        %v1081 = vadd.f32 %v679, %v1077
        %v1082 = vld [vmem:[%s642] sm:$0x1]
        %v1083 = vld [vmem:[%s645] sm:$0x1]
        %v1084 = vsel %vm706, %v1080, 0.0
        %1085 = vadd.xlane.f32.xlu0 %v1084
        %v1086 = vpop.xlane.xlu0 %1085
        %v1087 = vsel %vm706, %v1081, 0.0
        %1088 = vadd.xlane.f32.xlu0 %v1087
        %v1089 = vpop.xlane.xlu0 %1088
        %v1090 = vrcp.pop 32.0
        %v1091 = vmul.f32 %v1086, %v1090
        %v1092 = vmul.f32 %v1089, %v1090
        %v1093 = vsub.f32 %v1080, %v1091
        %v1094 = vsub.f32 %v1081, %v1092
        %v1095 = vmul.f32 %v1093, %v1093
        %v1096 = vmul.f32 %v1094, %v1094
        %v1097 = vsel %vm706, %v1095, 0.0
        %1098 = vadd.xlane.f32.xlu0 %v1097
        %v1099 = vpop.xlane.xlu0 %1098
        %v1100 = vsel %vm706, %v1096, 0.0
        %1101 = vadd.xlane.f32.xlu0 %v1100
        %v1102 = vpop.xlane.xlu0 %1101
        %v1103 = vmul.f32 %v1099, %v1090
        %v1104 = vmul.f32 %v1102, %v1090
        %v1105 = vadd.f32 %v1103, 1e-12
        %v1106 = vadd.f32 %v1104, 1e-12
        %v1107 = vrsqrt.pop %v1105
        %v1108 = vrsqrt.pop %v1106
        %v1109 = vmul.f32 %v1093, %v1107
        %v1110 = vmul.f32 %v1094, %v1108
        %v1112 = vlaneseq
        %v1113 = vshrl.u32 %v1112, 7
        %v1114 = vsub.s32 0, %v1113
        %v1115 = vrot.slane %v1082, %v1114
        %v1117 = vmul.f32 %v1109, %v1115
        %v1118 = vmul.f32 %v1110, %v1115
        %v1120 = vlaneseq
        %v1121 = vshrl.u32 %v1120, 7
        %v1122 = vsub.s32 0, %v1121
        %v1123 = vrot.slane %v1083, %v1122
        %v1125 = vadd.f32 %v1117, %v1123
        %v1126 = vadd.f32 %v1118, %v1123
        %v1127 = vpack.c.bf16 %v1126, %v1125
        %v1128 = vld [vmem:[%s650] sm:$0xf]
        %v1129 = vld [vmem:[%s650 + $0x4] sm:$0xf]
        %v1130 = vld [vmem:[%s650 + $0x8] sm:$0xf]
        %v1131 = vld [vmem:[%s650 + $0xc] sm:$0xf]
        %v1132 = vld [vmem:[%s653] sm:$0x1]
        %v1134 = vlaneseq
        %v1135 = vshrl.u32 %v1134, 7
        %v1136 = vsub.s32 0, %v1135
        %v1137 = vrot.slane %v1132, %v1136
        %v1143 = vunpack.c.l.b16 %v1128
        %v1144 = vunpack.c.l.b16 %v1129
        %v1145 = vunpack.c.l.b16 %v1130
        %v1146 = vunpack.c.l.b16 %v1131
        %v1147 = vpack.c.b16 %v1144, %v1143
        %v1148 = vpack.c.b16 %v1146, %v1145
        %v1152 = vsel %vm706, %v1127, 0
        %1154 = vmatprep.subr.bf16.mxu0 0
        %1155 = vmatpush1.bf16.msra.mxu0 %v1147
        %1156 = vmatprep.subr.bf16.mxu0 0
        %1157 = vmatpush1.bf16.msra.mxu0 %v1148
        %1158 = vmatprep.subr.bf16.mxu0 0
        %1159 = vmatpush1.bf16.msra.mxu0 0
        %1160 = vmatprep.subr.bf16.mxu0 0
        %1161 = vmatpush1.bf16.msra.mxu0 0
        %1162 = vmatprep.subr.bf16.mxu0 0
        %1163 = vmatpush1.bf16.msra.mxu0 0
        %1164 = vmatprep.subr.bf16.mxu0 0
        %1165 = vmatpush1.bf16.msra.mxu0 0
        %1166 = vmatprep.subr.bf16.mxu0 0
        %1167 = vmatpush1.bf16.msra.mxu0 0
        %1168 = vmatprep.subr.bf16.mxu0 0
        %1169 = vmatpush1.bf16.msra.mxu0 0
        %1170 = vmatprep.subr.bf16.mxu0 0
        %1171 = vmatpush1.bf16.msra.mxu0 0
        %1172 = vmatprep.subr.bf16.mxu0 0
        %1173 = vmatpush1.bf16.msra.mxu0 0
        %1174 = vmatprep.subr.bf16.mxu0 0
        %1175 = vmatpush1.bf16.msra.mxu0 0
        %1176 = vmatprep.subr.bf16.mxu0 0
        %1177 = vmatpush1.bf16.msra.mxu0 0
        %1178 = vmatprep.subr.bf16.mxu0 0
        %1179 = vmatpush1.bf16.msra.mxu0 0
        %1180 = vmatprep.subr.bf16.mxu0 0
        %1181 = vmatpush1.bf16.msra.mxu0 0
        %1182 = vmatprep.subr.bf16.mxu0 0
        %1183 = vmatpush1.bf16.msra.mxu0 0
        %1184 = vmatprep.subr.bf16.mxu0 0
        %1185 = vmatpush1.bf16.msra.mxu0 0
        %1186 = vmatprep.mubr.bf16.mxu0 0
        %1187 = vmatmul.mubr.bf16.gmra.mrb[0].mxu0 %v1152
        %v1188 = vpop.f32.mrb[0].mxu0
        %v1189 = vadd.f32 %v1137, %v1188
        %v1190 = vpop.f32.mrb[0].mxu0
        %v1191 = vpop.f32.mrb[0].mxu0
        %v1192 = vadd.f32 %v1137, %v1191
        %v1193 = vpop.f32.mrb[0].mxu0
        %1194 = vdwg.mxu0
        %v1195 = vmul.f32 %v1189, %v1189
        %v1196 = vmul.f32 %v1192, %v1192
        %v1197 = vmul.f32 %v1189, %v1195
        %v1198 = vmul.f32 %v1192, %v1196
        %v1199 = vmul.f32 %v1197, 0.044715
        %v1200 = vmul.f32 %v1198, 0.044715
        %v1201 = vadd.f32 %v1189, %v1199
        %v1202 = vadd.f32 %v1192, %v1200
        %v1203 = vmul.f32 %v1201, 0.7978846
        %v1204 = vmul.f32 %v1202, 0.7978846
        %v1205 = vtanh.pop %v1203
        %v1206 = vtanh.pop %v1204
        %v1207 = vadd.f32 %v1205, 1.0
        %v1208 = vadd.f32 %v1206, 1.0
        %v1209 = vmul.f32 %v1207, 0.5
        %v1210 = vmul.f32 %v1208, 0.5
        %v1211 = vmul.f32 %v1189, %v1209
        %v1212 = vmul.f32 %v1192, %v1210
        %v1213 = vpack.c.bf16 %v1212, %v1211
        %v1214 = vld [vmem:[%s658] sm:$0xf]
        %v1215 = vld [vmem:[%s658 + $0x4] sm:$0xf]
        %v1216 = vld [vmem:[%s658 + $0x8] sm:$0xf]
        %v1217 = vld [vmem:[%s658 + $0xc] sm:$0xf]
        %v1218 = vld [vmem:[%s658 + $0x10] sm:$0xf]
        %v1219 = vld [vmem:[%s658 + $0x14] sm:$0xf]
        %v1220 = vld [vmem:[%s658 + $0x18] sm:$0xf]
        %v1221 = vld [vmem:[%s658 + $0x1c] sm:$0xf]
        %v1222 = vld [vmem:[%s661] sm:$0x1]
        %v1224 = vlaneseq
        %v1225 = vshrl.u32 %v1224, 7
        %v1226 = vsub.s32 0, %v1225
        %v1227 = vrot.slane %v1222, %v1226
        %v1237 = vunpack.c.l.b16 %v1214
        %v1238 = vunpack.c.l.b16 %v1215
        %v1239 = vunpack.c.l.b16 %v1216
        %v1240 = vunpack.c.l.b16 %v1217
        %v1241 = vunpack.c.l.b16 %v1218
        %v1242 = vunpack.c.l.b16 %v1219
        %v1243 = vunpack.c.l.b16 %v1220
        %v1244 = vunpack.c.l.b16 %v1221
        %v1245 = vpack.c.b16 %v1238, %v1237
        %v1246 = vpack.c.b16 %v1240, %v1239
        %v1247 = vpack.c.b16 %v1242, %v1241
        %v1248 = vpack.c.b16 %v1244, %v1243
        %vm1253 = vcmask 523264
        %v1255 = vsel %vm1253, %v1213, 0
        %1257 = vmatprep.subr.bf16.mxu0 0
        %1258 = vmatpush1.bf16.msra.mxu0 %v1245
        %1259 = vmatprep.subr.bf16.mxu0 0
        %1260 = vmatpush1.bf16.msra.mxu0 %v1246
        %1261 = vmatprep.subr.bf16.mxu0 0
        %1262 = vmatpush1.bf16.msra.mxu0 %v1247
        %1263 = vmatprep.subr.bf16.mxu0 0
        %1264 = vmatpush1.bf16.msra.mxu0 %v1248
        %1265 = vmatprep.subr.bf16.mxu0 0
        %1266 = vmatpush1.bf16.msra.mxu0 0
        %1267 = vmatprep.subr.bf16.mxu0 0
        %1268 = vmatpush1.bf16.msra.mxu0 0
        %1269 = vmatprep.subr.bf16.mxu0 0
        %1270 = vmatpush1.bf16.msra.mxu0 0
        %1271 = vmatprep.subr.bf16.mxu0 0
        %1272 = vmatpush1.bf16.msra.mxu0 0
        %1273 = vmatprep.subr.bf16.mxu0 0
        %1274 = vmatpush1.bf16.msra.mxu0 0
        %1275 = vmatprep.subr.bf16.mxu0 0
        %1276 = vmatpush1.bf16.msra.mxu0 0
        %1277 = vmatprep.subr.bf16.mxu0 0
        %1278 = vmatpush1.bf16.msra.mxu0 0
        %1279 = vmatprep.subr.bf16.mxu0 0
        %1280 = vmatpush1.bf16.msra.mxu0 0
        %1281 = vmatprep.subr.bf16.mxu0 0
        %1282 = vmatpush1.bf16.msra.mxu0 0
        %1283 = vmatprep.subr.bf16.mxu0 0
        %1284 = vmatpush1.bf16.msra.mxu0 0
        %1285 = vmatprep.subr.bf16.mxu0 0
        %1286 = vmatpush1.bf16.msra.mxu0 0
        %1287 = vmatprep.subr.bf16.mxu0 0
        %1288 = vmatpush1.bf16.msra.mxu0 0
        %1289 = vmatprep.mubr.bf16.mxu0 0
        %1290 = vmatmul.mubr.bf16.gmra.mrb[0].mxu0 %v1255
        %v1291 = vpop.f32.mrb[0].mxu0
        %v1292 = vadd.f32 %v1227, %v1291
        %v1293 = vpop.f32.mrb[0].mxu0
        %v1294 = vpop.f32.mrb[0].mxu0
        %v1295 = vadd.f32 %v1227, %v1294
        %v1296 = vpop.f32.mrb[0].mxu0
        %1297 = vdwg.mxu0
        %v1298 = vadd.f32 %v1125, %v1292
        %v1299 = vadd.f32 %v1126, %v1295
        %v1300 = vld [vmem:[%s664] sm:$0x1]
        %v1301 = vld [vmem:[%s667] sm:$0x1]
        %v1302 = vsel %vm706, %v1298, 0.0
        %1303 = vadd.xlane.f32.xlu0 %v1302
        %v1304 = vpop.xlane.xlu0 %1303
        %v1305 = vsel %vm706, %v1299, 0.0
        %1306 = vadd.xlane.f32.xlu0 %v1305
        %v1307 = vpop.xlane.xlu0 %1306
        %v1308 = vmul.f32 %v1304, %v1090
        %v1309 = vmul.f32 %v1307, %v1090
        %v1310 = vsub.f32 %v1298, %v1308
        %v1311 = vsub.f32 %v1299, %v1309
        %v1312 = vmul.f32 %v1310, %v1310
        %v1313 = vmul.f32 %v1311, %v1311
        %v1314 = vsel %vm706, %v1312, 0.0
        %1315 = vadd.xlane.f32.xlu0 %v1314
        %v1316 = vpop.xlane.xlu0 %1315
        %v1317 = vsel %vm706, %v1313, 0.0
        %1318 = vadd.xlane.f32.xlu0 %v1317
        %v1319 = vpop.xlane.xlu0 %1318
        %v1320 = vmul.f32 %v1316, %v1090
        %v1321 = vmul.f32 %v1319, %v1090
        %v1322 = vadd.f32 %v1320, 1e-12
        %v1323 = vadd.f32 %v1321, 1e-12
        %v1324 = vrsqrt.pop %v1322
        %v1325 = vrsqrt.pop %v1323
        %v1326 = vmul.f32 %v1310, %v1324
        %v1327 = vmul.f32 %v1311, %v1325
        %v1329 = vlaneseq
        %v1330 = vshrl.u32 %v1329, 7
        %v1331 = vsub.s32 0, %v1330
        %v1332 = vrot.slane %v1300, %v1331
        %v1334 = vmul.f32 %v1326, %v1332
        %v1335 = vmul.f32 %v1327, %v1332
        %v1337 = vlaneseq
        %v1338 = vshrl.u32 %v1337, 7
        %v1339 = vsub.s32 0, %v1338
        %v1340 = vrot.slane %v1301, %v1339
        %v1342 = vadd.f32 %v1334, %v1340
        %v1343 = vadd.f32 %v1335, %v1340
        %1344 = vst.msk [vmem:[#allocation2] sm:$0xff] %vm706, %v1342
        %1345 = vst.msk [vmem:[#allocation2 + $0x8] sm:$0xff] %vm706, %v1343
        %p1346 = scmp.eq.s32.totalorder %s28, 1
        // Predicated region
        $region89: #{tpu_custom_call.1} parent=79 // pred_check
          %p1347 = pneg %p1346
        $region90: #{tpu_custom_call.1} parent=79 // pred_check_branch
          %1349 = sbr.rel (%p1347) target = $region92
        $region91: #{tpu_custom_call.1} parent=79 // pred_region
          %v1350 = vld [vmem:[%s2] sm:$0xff]
          %v1351 = vld [vmem:[%s2 + $0x8] sm:$0xff]
          %vm1352 = vcmp.eq.f32.partialorder %v1350, 0.0
          %vm1353 = vcmp.eq.f32.partialorder %v1351, 0.0
          %v1354 = vsel %vm1352, 1, 0
          %v1355 = vsel %vm1353, 1, 0
          %1356 = vset.pattern.permute.xlu0 0
          %1357 = vperm.xlu0 %1356, %v1354
          %v1358 = vpop.permute.xlu0 %1357
          %1359 = vset.pattern.permute.xlu0 0
          %1360 = vperm.xlu0 %1359, %v1355
          %v1361 = vpop.permute.xlu0 %1360
          %vm1362 = vcmp.eq.s32.totalorder %v1358, 1
          %vm1363 = vcmp.eq.s32.totalorder %v1361, 1
          %v1364 = vsel %vm1362, -1e+09, %v1342
          %v1365 = vsel %vm1363, -1e+09, %v1343
          %v1366 = vsel %vm706, %v1364, -inf
          %v1367 = vrot.slane %v1366, 4
          %v1368 = vmax.f32 %v1366, %v1367
          %v1369 = vrot.slane %v1368, 2
          %v1370 = vmax.f32 %v1368, %v1369
          %v1371 = vrot.slane %v1370, 1
          %v1372 = vmax.f32 %v1370, %v1371
          %v1373 = vsel %vm706, %v1365, -inf
          %v1374 = vrot.slane %v1373, 4
          %v1375 = vmax.f32 %v1373, %v1374
          %v1376 = vrot.slane %v1375, 2
          %v1377 = vmax.f32 %v1375, %v1376
          %v1378 = vrot.slane %v1377, 1
          %v1379 = vmax.f32 %v1377, %v1378
          %vm1382 = vcmask 1041409
          %v1383 = vsel %vm1382, %v1379, %v1372
          %vm1385 = vcmask 254976
          %1386 = vst.msk [vmem:[#allocation6] sm:$0x3] %vm1385, %v1383
        $region92: #{tpu_custom_call.1} parent=79 // pred_fallthru
          _
        // Predicated region
        $region93: #{tpu_custom_call.1} parent=79 // pred_check
          %p1387 = pneg %p416
        $region94: #{tpu_custom_call.1} parent=79 // pred_check_branch
          %1389 = sbr.rel (%p1387) target = $region96
        $region95: #{tpu_custom_call.1} parent=79 // pred_region
          %s1391 = ssub.s32 32, 32
          %1392 = vsyncadd [#allocation5], %s1391
          %s1394 = sshll.u32 [#allocation6], 4
          %s1395 = int_to_ptr.vmem [resolvable:$true] %s1394
          %1397 = dma.vmem_to_hbm [thread:$0]  %s1395, 32, %s15, [#allocation5]
        $region96: #{tpu_custom_call.1} parent=79 // pred_fallthru
          _
        // Predicated region
        $region97: #{tpu_custom_call.1} parent=79 // pred_check
          %p1398 = pneg %p416
        $region98: #{tpu_custom_call.1} parent=79 // pred_check_branch
          %1400 = sbr.rel (%p1398) target = $region100
        $region99: #{tpu_custom_call.1} parent=79 // pred_region
          %1401 = dma.done [#allocation5], 32
        $region100: #{tpu_custom_call.1} parent=79 // pred_fallthru
          _
      $region80: #{tpu_custom_call.1} parent=5 // pred_fallthru
        _
      %p1402 = scmp.le.s32.totalorder 2, %s23
      // Predicated region
      $region101: #{tpu_custom_call.1} parent=5 // pred_check
        %p1403 = pneg %p1402
      $region102: #{tpu_custom_call.1} parent=5 // pred_check_branch
        %1405 = sbr.rel (%p1403) target = $region104
      $region103: #{tpu_custom_call.1} parent=5 // pred_region
        %s1406 = ssub.s32 %s23, 2
      $region104: #{tpu_custom_call.1} parent=5 // pred_fallthru
        _
    $region6: #{tpu_custom_call.1} parent=1 // loop_footer
      %s27 = sadd.s32 1, %s23
    $region7: #{tpu_custom_call.1} parent=1 // loop_footer_branch
      %22 = sbr.rel target = $region3
    $region8: #{tpu_custom_call.1} parent=1 // loop_exit
      _
    %1407 = vsyncpa [#allocation4], 1
    %s1408 = scalar_lea.sflag [#allocation4], 1
    %1409 = vsyncpa %s1408, 1
    %1410 = vsyncpa [#allocation5], 1
    %s1411 = scalar_lea.sflag [#allocation5], 1
    %1412 = vsyncpa %s1411, 1

</llo_original>
